<compile_context>
chip_gen: v5e
topology: v5e:2x2
jax: 0.10.0
libtpu: 0.0.40
codegen_flags: <defaults>
</compile_context>

<pallas_src>
import numpy as np
import jax
import jax.numpy as jnp
from jax.experimental import pallas as pl
from jax.experimental.pallas import tpu as pltpu

INPUT_DIM = 186        # 63 bond lengths + 62 bond angles + 61 dihedrals
HIDDEN_DIM = 50
NUM_COMPONENTS = 5
PI_DIMS = 186          # pi head:   930 = 186 * 5
MU_DIMS = 125          # mu/sigma:  625 = 125 * 5
LOC_DIMS = 61          # loc/conc:  305 =  61 * 5
COV_SCALING = 0.8

PI_TOT = PI_DIMS * NUM_COMPONENTS     # 930
MU_TOT = MU_DIMS * NUM_COMPONENTS     # 625
LOC_TOT = LOC_DIMS * NUM_COMPONENTS   # 305

# packed / padded WEIGHT column layout (every slab a multiple of 128 lanes;
# padding costs zero extra MXU column tiles, only the weight DMA once).
PI_SLAB = 256                              # 186 -> 256 per component slab
PI_PAD = NUM_COMPONENTS * PI_SLAB          # 1280
MU_PAD = 640                               # 625 -> 640
LOC_PAD = 384                              # 305 -> 384
NTOT = PI_PAD + 2 * MU_PAD + 2 * LOC_PAD   # 3328

OFF_MU = PI_PAD                            # 1280
OFF_SIG = OFF_MU + MU_PAD                  # 1920
OFF_LOC = OFF_SIG + MU_PAD                 # 2560
OFF_CONC = OFF_LOC + LOC_PAD               # 2944


def _round_up(n, m):
    return ((n + m - 1) // m) * m


def _sigmoid(z):
    # single-EUP, overflow-free sigmoid: 0.5 * tanh(z/2) + 0.5
    return 0.5 * jnp.tanh(0.5 * z) + 0.5


def _softplus(z):
    # numerically-stable softplus: max(z,0) + log(1 + exp(-|z|))
    return jnp.maximum(z, 0.0) + jnp.log(1.0 + jnp.exp(-jnp.abs(z)))


def mdn_kernel(x_ref, w1_ref, b1_ref, wh_ref, bh_ref,
               pi_ref, mu_ref, sig_ref, loc_ref, conc_ref):
    x = x_ref[...]

    # fc1: Linear + Sigmoid
    fc = _sigmoid(jnp.dot(x, w1_ref[...], preferred_element_type=jnp.float32)
                  + b1_ref[...])

    # --- pi head: 5 de-interleaved, lane-aligned slabs of width PI_SLAB ------
    pi_logits = (jnp.dot(fc, wh_ref[:, :PI_PAD],
                         preferred_element_type=jnp.float32)
                 + bh_ref[:, :PI_PAD])
    slabs = [pi_logits[:, k * PI_SLAB:(k + 1) * PI_SLAB]
             for k in range(NUM_COMPONENTS)]
    m = slabs[0]
    for s in slabs[1:]:
        m = jnp.maximum(m, s)                       # per-group max (elementwise)
    exps = [jnp.exp(s - m) for s in slabs]
    denom = exps[0]
    for e in exps[1:]:
        denom = denom + e
    # approx reciprocal + one Newton step: ~1e-7 rel error, EUP slot
    r = pl.reciprocal(denom, approx=True)
    inv = r * (2.0 - denom * r)
    for k in range(NUM_COMPONENTS):
        # exact-width (186-col) stores; pad lanes never reach HBM
        pi_ref[:, k * PI_DIMS:(k + 1) * PI_DIMS] = (exps[k] * inv)[:, :PI_DIMS]

    # --- remaining heads: per-head dot + activation + immediate store --------
    mu = (jnp.dot(fc, wh_ref[:, OFF_MU:OFF_SIG],
                  preferred_element_type=jnp.float32)
          + bh_ref[:, OFF_MU:OFF_SIG])
    mu_ref[...] = mu[:, :MU_TOT]

    sig = (jnp.dot(fc, wh_ref[:, OFF_SIG:OFF_LOC],
                   preferred_element_type=jnp.float32)
           + bh_ref[:, OFF_SIG:OFF_LOC])
    sig_ref[...] = (_sigmoid(sig) * COV_SCALING)[:, :MU_TOT]

    loc = (jnp.dot(fc, wh_ref[:, OFF_LOC:OFF_CONC],
                   preferred_element_type=jnp.float32)
           + bh_ref[:, OFF_LOC:OFF_CONC])
    loc_ref[...] = loc[:, :LOC_TOT]

    conc = (jnp.dot(fc, wh_ref[:, OFF_CONC:],
                    preferred_element_type=jnp.float32)
            + bh_ref[:, OFF_CONC:])
    conc_ref[...] = _softplus(conc)[:, :LOC_TOT]


def init_params(key):
    """Deterministic init mimicking nn.Linear default (U(-1/sqrt(fan_in), ...)).

    Weights stored as (in_features, out_features) so y = x @ W + b.
    """
    def linear(k, fan_in, fan_out):
        kw, kb = jax.random.split(k)
        bound = 1.0 / np.sqrt(fan_in)
        w = jax.random.uniform(kw, (fan_in, fan_out), jnp.float32, -bound, bound)
        b = jax.random.uniform(kb, (1, fan_out), jnp.float32, -bound, bound)
        return w, b

    ks = jax.random.split(key, 6)
    p = {}
    p["w1"], p["b1"] = linear(ks[0], INPUT_DIM, HIDDEN_DIM)
    p["wpi"], p["bpi"] = linear(ks[1], HIDDEN_DIM, PI_DIMS * NUM_COMPONENTS)
    p["wmu"], p["bmu"] = linear(ks[2], HIDDEN_DIM, MU_DIMS * NUM_COMPONENTS)
    p["wsig"], p["bsig"] = linear(ks[3], HIDDEN_DIM, MU_DIMS * NUM_COMPONENTS)
    p["wloc"], p["bloc"] = linear(ks[4], HIDDEN_DIM, LOC_DIMS * NUM_COMPONENTS)
    p["wconc"], p["bconc"] = linear(ks[5], HIDDEN_DIM, LOC_DIMS * NUM_COMPONENTS)
    return p


def pack_params(p):
    """One-time host/XLA-side repacking of head weights into the fused layout."""
    def pad_cols(w, b, width):
        pad = width - w.shape[1]
        return (jnp.pad(w, ((0, 0), (0, pad))),
                jnp.pad(b, ((0, 0), (0, pad))))

    # de-interleave pi: interleaved column index d*5 + k  ->  slab k, column d
    wpi = p["wpi"].reshape(HIDDEN_DIM, PI_DIMS, NUM_COMPONENTS)
    bpi = p["bpi"].reshape(1, PI_DIMS, NUM_COMPONENTS)
    w_parts, b_parts = [], []
    for k in range(NUM_COMPONENTS):
        wk, bk = pad_cols(wpi[:, :, k], bpi[:, :, k], PI_SLAB)
        w_parts.append(wk)
        b_parts.append(bk)

    for (wname, bname, width) in (("wmu", "bmu", MU_PAD),
                                  ("wsig", "bsig", MU_PAD),
                                  ("wloc", "bloc", LOC_PAD),
                                  ("wconc", "bconc", LOC_PAD)):
        w, b = pad_cols(p[wname], p[bname], width)
        w_parts.append(w)
        b_parts.append(b)

    wh = jnp.concatenate(w_parts, axis=1)   # [50, 3328]
    bh = jnp.concatenate(b_parts, axis=1)   # [1, 3328]
    return {"w1": p["w1"], "b1": p["b1"], "wh": wh, "bh": bh}


def _mdn_forward_impl(x, packed, tm):
    B = x.shape[0]
    if B <= 8:
        TM = B
    elif B <= tm:
        # ensure >= 2 grid steps so dimension_semantics=("parallel",) can use
        # both TensorCores on v7x (v5e/v6e: 1 TC, unaffected)
        TM = max(8, _round_up(-(-B // 2), 8))
    else:
        TM = tm
    grid = (pl.cdiv(B, TM),)

    const = lambda i: (0, 0)      # weights/biases: resident (loaded once)
    batch = lambda i: (i, 0)      # x / outputs: tiled along batch

    pi_s, mu, sigma, loc, conc = pl.pallas_call(
        mdn_kernel,
        out_shape=(
            jax.ShapeDtypeStruct((B, PI_TOT), jnp.float32),   # pi, slab layout
            jax.ShapeDtypeStruct((B, MU_TOT), jnp.float32),   # mu
            jax.ShapeDtypeStruct((B, MU_TOT), jnp.float32),   # sigma
            jax.ShapeDtypeStruct((B, LOC_TOT), jnp.float32),  # loc
            jax.ShapeDtypeStruct((B, LOC_TOT), jnp.float32),  # concentration
        ),
        grid=grid,
        in_specs=[
            pl.BlockSpec((TM, INPUT_DIM), batch),
            pl.BlockSpec((INPUT_DIM, HIDDEN_DIM), const),
            pl.BlockSpec((1, HIDDEN_DIM), const),
            pl.BlockSpec((HIDDEN_DIM, NTOT), const),
            pl.BlockSpec((1, NTOT), const),
        ],
        out_specs=(
            pl.BlockSpec((TM, PI_TOT), batch),
            pl.BlockSpec((TM, MU_TOT), batch),
            pl.BlockSpec((TM, MU_TOT), batch),
            pl.BlockSpec((TM, LOC_TOT), batch),
            pl.BlockSpec((TM, LOC_TOT), batch),
        ),
        compiler_params=pltpu.CompilerParams(
            dimension_semantics=("parallel",),      # shard batch over TCs (v7x)
            vmem_limit_bytes=48 << 20,              # safe on v7x (64 MiB VMEM)
        ),
    )(x, packed["w1"], packed["b1"], packed["wh"], packed["bh"])

    # pi: slab layout (B, 5*186) -> (B, 186, 5).  This transpose is required by
    # the PyTorch output layout; everything else below is a free view.
    pi = jnp.transpose(pi_s.reshape(B, NUM_COMPONENTS, PI_DIMS), (0, 2, 1))
    mu = mu.reshape(B, MU_DIMS, NUM_COMPONENTS)
    sigma = sigma.reshape(B, MU_DIMS, NUM_COMPONENTS)
    loc = loc.reshape(B, LOC_DIMS, NUM_COMPONENTS)
    conc = conc.reshape(B, LOC_DIMS, NUM_COMPONENTS)
    return pi, mu, sigma, loc, conc


# tm=512 keeps (in + out + intermediates) ~23 MB/tile, well inside the 48 MiB
# limit on every generation; on v5e/v6e (128 MiB VMEM) tm can be raised to
# 1024+ together with a larger vmem_limit_bytes.
mdn_forward = jax.jit(_mdn_forward_impl, static_argnums=2)


def mdn_forward_ref(x, params):
    """Pure-JAX reference (original, un-packed weights) for correctness."""
    fc = jax.nn.sigmoid(x @ params["w1"] + params["b1"])
    pi_ = (fc @ params["wpi"] + params["bpi"]).reshape(-1, PI_DIMS, 5)
    pi = jax.nn.softmax(pi_, axis=-1)
    mu = (fc @ params["wmu"] + params["bmu"]).reshape(-1, MU_DIMS, 5)
    sigma = (jax.nn.sigmoid(fc @ params["wsig"] + params["bsig"]) *
             COV_SCALING).reshape(-1, MU_DIMS, 5)
    loc = (fc @ params["wloc"] + params["bloc"]).reshape(-1, LOC_DIMS, 5)
    conc = jax.nn.softplus(fc @ params["wconc"] +
                           params["bconc"]).reshape(-1, LOC_DIMS, 5)
    return pi, mu, sigma, loc, conc


if __name__ == "__main__":
    key = jax.random.PRNGKey(0)
    kx, kp = jax.random.split(key)

    B = 4
    x = jax.random.uniform(kx, (B, INPUT_DIM), jnp.float32, 0.0001, 0.9999)
    params = init_params(kp)
    packed = pack_params(params)

    outs = mdn_forward(x, packed, 512)
    outs = jax.block_until_ready(outs)

    refs = mdn_forward_ref(x, params)
    names = ["pi", "mu", "sigma", "loc", "concentration"]
    for name, o, r in zip(names, outs, refs):
        np.testing.assert_allclose(np.asarray(o), np.asarray(r),
                                   rtol=1e-5, atol=1e-5, err_msg=name)

    print("KERNEL_OK")
</pallas_src>

<mosaic_0001>
module attributes {stable_mosaic.version = 11 : i64} {
  func.func @mdn_kernel(%arg0: i32, %arg1: memref<4x186xf32, #tpu.memory_space<vmem>>, %arg2: memref<186x50xf32, #tpu.memory_space<vmem>>, %arg3: memref<1x50xf32, #tpu.memory_space<vmem>>, %arg4: memref<50x3328xf32, #tpu.memory_space<vmem>>, %arg5: memref<1x3328xf32, #tpu.memory_space<vmem>>, %arg6: memref<4x930xf32, #tpu.memory_space<vmem>>, %arg7: memref<4x625xf32, #tpu.memory_space<vmem>>, %arg8: memref<4x625xf32, #tpu.memory_space<vmem>>, %arg9: memref<4x305xf32, #tpu.memory_space<vmem>>, %arg10: memref<4x305xf32, #tpu.memory_space<vmem>>) attributes {dimension_semantics = [#tpu.dimension_semantics<parallel>], iteration_bounds = array<i64: 1>, scalar_prefetch = 0 : i64, scratch_operands = 0 : i64, tpu.core_type = #tpu.core_type<tc>, window_params = [{transform_indices = @transform_0, window_bounds = array<i64: 4, 186>}, {pipeline_mode = #tpu.pipeline_mode<synchronous>, transform_indices = @transform_1, window_bounds = array<i64: 186, 50>}, {pipeline_mode = #tpu.pipeline_mode<synchronous>, transform_indices = @transform_2, window_bounds = array<i64: 1, 50>}, {pipeline_mode = #tpu.pipeline_mode<synchronous>, transform_indices = @transform_3, window_bounds = array<i64: 50, 3328>}, {pipeline_mode = #tpu.pipeline_mode<synchronous>, transform_indices = @transform_4, window_bounds = array<i64: 1, 3328>}, {transform_indices = @transform_5, window_bounds = array<i64: 4, 930>}, {transform_indices = @transform_6, window_bounds = array<i64: 4, 625>}, {transform_indices = @transform_7, window_bounds = array<i64: 4, 625>}, {transform_indices = @transform_8, window_bounds = array<i64: 4, 305>}, {transform_indices = @transform_9, window_bounds = array<i64: 4, 305>}]} {
    %c0 = arith.constant 0 : index
    %c0_0 = arith.constant 0 : index
    %0 = vector.load %arg1[%c0, %c0_0] : memref<4x186xf32, #tpu.memory_space<vmem>>, vector<4x186xf32>
    %c0_1 = arith.constant 0 : index
    %c0_2 = arith.constant 0 : index
    %1 = vector.load %arg2[%c0_1, %c0_2] : memref<186x50xf32, #tpu.memory_space<vmem>>, vector<186x50xf32>
    %cst = arith.constant dense<0.000000e+00> : vector<4x50xf32>
    %2 = tpu.matmul %0, %1, %cst {dimension_numbers = #tpu.dot_dimension_numbers<[1], [0], [0], [1], [0, 0, 1, 1], [], []>} : vector<4x186xf32>, vector<186x50xf32>, vector<4x50xf32> -> vector<4x50xf32>
    %c0_3 = arith.constant 0 : index
    %c0_4 = arith.constant 0 : index
    %3 = vector.load %arg3[%c0_3, %c0_4] : memref<1x50xf32, #tpu.memory_space<vmem>>, vector<1x50xf32>
    %4 = vector.broadcast %3 : vector<1x50xf32> to vector<4x50xf32>
    %5 = arith.addf %2, %4 : vector<4x50xf32>
    %cst_5 = arith.constant 5.000000e-01 : f32
    %6 = vector.broadcast %cst_5 : f32 to vector<4x50xf32>
    %7 = arith.mulf %6, %5 : vector<4x50xf32>
    %8 = math.tanh %7 : vector<4x50xf32>
    %cst_6 = arith.constant 5.000000e-01 : f32
    %9 = vector.broadcast %cst_6 : f32 to vector<4x50xf32>
    %10 = arith.mulf %9, %8 : vector<4x50xf32>
    %cst_7 = arith.constant 5.000000e-01 : f32
    %11 = vector.broadcast %cst_7 : f32 to vector<4x50xf32>
    %12 = arith.addf %10, %11 : vector<4x50xf32>
    %c0_8 = arith.constant 0 : index
    %c0_9 = arith.constant 0 : index
    %13 = vector.load %arg4[%c0_8, %c0_9] : memref<50x3328xf32, #tpu.memory_space<vmem>>, vector<50x1280xf32>
    %cst_10 = arith.constant dense<0.000000e+00> : vector<4x1280xf32>
    %14 = tpu.matmul %12, %13, %cst_10 {dimension_numbers = #tpu.dot_dimension_numbers<[1], [0], [0], [1], [0, 0, 1, 1], [], []>} : vector<4x50xf32>, vector<50x1280xf32>, vector<4x1280xf32> -> vector<4x1280xf32>
    %c0_11 = arith.constant 0 : index
    %c0_12 = arith.constant 0 : index
    %15 = vector.load %arg5[%c0_11, %c0_12] : memref<1x3328xf32, #tpu.memory_space<vmem>>, vector<1x1280xf32>
    %16 = vector.broadcast %15 : vector<1x1280xf32> to vector<4x1280xf32>
    %17 = arith.addf %14, %16 : vector<4x1280xf32>
    %18 = vector.extract_strided_slice %17 {offsets = [0, 0], sizes = [4, 256], strides = [1, 1]} : vector<4x1280xf32> to vector<4x256xf32>
    %19 = vector.extract_strided_slice %17 {offsets = [0, 256], sizes = [4, 256], strides = [1, 1]} : vector<4x1280xf32> to vector<4x256xf32>
    %20 = vector.extract_strided_slice %17 {offsets = [0, 512], sizes = [4, 256], strides = [1, 1]} : vector<4x1280xf32> to vector<4x256xf32>
    %21 = vector.extract_strided_slice %17 {offsets = [0, 768], sizes = [4, 256], strides = [1, 1]} : vector<4x1280xf32> to vector<4x256xf32>
    %22 = vector.extract_strided_slice %17 {offsets = [0, 1024], sizes = [4, 256], strides = [1, 1]} : vector<4x1280xf32> to vector<4x256xf32>
    %23 = arith.maximumf %18, %19 : vector<4x256xf32>
    %24 = arith.maximumf %23, %20 : vector<4x256xf32>
    %25 = arith.maximumf %24, %21 : vector<4x256xf32>
    %26 = arith.maximumf %25, %22 : vector<4x256xf32>
    %27 = arith.subf %18, %26 : vector<4x256xf32>
    %28 = math.exp %27 : vector<4x256xf32>
    %29 = arith.subf %19, %26 : vector<4x256xf32>
    %30 = math.exp %29 : vector<4x256xf32>
    %31 = arith.subf %20, %26 : vector<4x256xf32>
    %32 = math.exp %31 : vector<4x256xf32>
    %33 = arith.subf %21, %26 : vector<4x256xf32>
    %34 = math.exp %33 : vector<4x256xf32>
    %35 = arith.subf %22, %26 : vector<4x256xf32>
    %36 = math.exp %35 : vector<4x256xf32>
    %37 = arith.addf %28, %30 : vector<4x256xf32>
    %38 = arith.addf %37, %32 : vector<4x256xf32>
    %39 = arith.addf %38, %34 : vector<4x256xf32>
    %40 = arith.addf %39, %36 : vector<4x256xf32>
    %41 = tpu.reciprocal %40 {approx = true} : vector<4x256xf32> -> vector<4x256xf32>
    %42 = arith.mulf %40, %41 : vector<4x256xf32>
    %cst_13 = arith.constant 2.000000e+00 : f32
    %43 = vector.broadcast %cst_13 : f32 to vector<4x256xf32>
    %44 = arith.subf %43, %42 : vector<4x256xf32>
    %45 = arith.mulf %41, %44 : vector<4x256xf32>
    %46 = arith.mulf %28, %45 : vector<4x256xf32>
    %47 = vector.extract_strided_slice %46 {offsets = [0, 0], sizes = [4, 186], strides = [1, 1]} : vector<4x256xf32> to vector<4x186xf32>
    %c0_14 = arith.constant 0 : index
    %c0_15 = arith.constant 0 : index
    %48 = vector.load %arg6[%c0_14, %c0_15] : memref<4x930xf32, #tpu.memory_space<vmem>>, vector<4x186xf32>
    tpu.vector_store %arg6[%c0_14, %c0_15], %47 {strides = array<i32>} : memref<4x930xf32, #tpu.memory_space<vmem>>, vector<4x186xf32>,
    %49 = arith.mulf %30, %45 : vector<4x256xf32>
    %50 = vector.extract_strided_slice %49 {offsets = [0, 0], sizes = [4, 186], strides = [1, 1]} : vector<4x256xf32> to vector<4x186xf32>
    %c0_16 = arith.constant 0 : index
    %c186 = arith.constant 186 : index
    %51 = vector.load %arg6[%c0_16, %c186] : memref<4x930xf32, #tpu.memory_space<vmem>>, vector<4x186xf32>
    tpu.vector_store %arg6[%c0_16, %c186], %50 {strides = array<i32>} : memref<4x930xf32, #tpu.memory_space<vmem>>, vector<4x186xf32>,
    %52 = arith.mulf %32, %45 : vector<4x256xf32>
    %53 = vector.extract_strided_slice %52 {offsets = [0, 0], sizes = [4, 186], strides = [1, 1]} : vector<4x256xf32> to vector<4x186xf32>
    %c0_17 = arith.constant 0 : index
    %c372 = arith.constant 372 : index
    %54 = vector.load %arg6[%c0_17, %c372] : memref<4x930xf32, #tpu.memory_space<vmem>>, vector<4x186xf32>
    tpu.vector_store %arg6[%c0_17, %c372], %53 {strides = array<i32>} : memref<4x930xf32, #tpu.memory_space<vmem>>, vector<4x186xf32>,
    %55 = arith.mulf %34, %45 : vector<4x256xf32>
    %56 = vector.extract_strided_slice %55 {offsets = [0, 0], sizes = [4, 186], strides = [1, 1]} : vector<4x256xf32> to vector<4x186xf32>
    %c0_18 = arith.constant 0 : index
    %c558 = arith.constant 558 : index
    %57 = vector.load %arg6[%c0_18, %c558] : memref<4x930xf32, #tpu.memory_space<vmem>>, vector<4x186xf32>
    tpu.vector_store %arg6[%c0_18, %c558], %56 {strides = array<i32>} : memref<4x930xf32, #tpu.memory_space<vmem>>, vector<4x186xf32>,
    %58 = arith.mulf %36, %45 : vector<4x256xf32>
    %59 = vector.extract_strided_slice %58 {offsets = [0, 0], sizes = [4, 186], strides = [1, 1]} : vector<4x256xf32> to vector<4x186xf32>
    %c0_19 = arith.constant 0 : index
    %c744 = arith.constant 744 : index
    %60 = vector.load %arg6[%c0_19, %c744] : memref<4x930xf32, #tpu.memory_space<vmem>>, vector<4x186xf32>
    tpu.vector_store %arg6[%c0_19, %c744], %59 {strides = array<i32>} : memref<4x930xf32, #tpu.memory_space<vmem>>, vector<4x186xf32>,
    %c0_20 = arith.constant 0 : index
    %c1280 = arith.constant 1280 : index
    %61 = vector.load %arg4[%c0_20, %c1280] : memref<50x3328xf32, #tpu.memory_space<vmem>>, vector<50x640xf32>
    %cst_21 = arith.constant dense<0.000000e+00> : vector<4x640xf32>
    %62 = tpu.matmul %12, %61, %cst_21 {dimension_numbers = #tpu.dot_dimension_numbers<[1], [0], [0], [1], [0, 0, 1, 1], [], []>} : vector<4x50xf32>, vector<50x640xf32>, vector<4x640xf32> -> vector<4x640xf32>
    %c0_22 = arith.constant 0 : index
    %c1280_23 = arith.constant 1280 : index
    %63 = vector.load %arg5[%c0_22, %c1280_23] : memref<1x3328xf32, #tpu.memory_space<vmem>>, vector<1x640xf32>
    %64 = vector.broadcast %63 : vector<1x640xf32> to vector<4x640xf32>
    %65 = arith.addf %62, %64 : vector<4x640xf32>
    %66 = vector.extract_strided_slice %65 {offsets = [0, 0], sizes = [4, 625], strides = [1, 1]} : vector<4x640xf32> to vector<4x625xf32>
    %c0_24 = arith.constant 0 : index
    %c0_25 = arith.constant 0 : index
    %67 = vector.load %arg7[%c0_24, %c0_25] : memref<4x625xf32, #tpu.memory_space<vmem>>, vector<4x625xf32>
    tpu.vector_store %arg7[%c0_24, %c0_25], %66 {strides = array<i32>} : memref<4x625xf32, #tpu.memory_space<vmem>>, vector<4x625xf32>,
    %c0_26 = arith.constant 0 : index
    %c1920 = arith.constant 1920 : index
    %68 = vector.load %arg4[%c0_26, %c1920] : memref<50x3328xf32, #tpu.memory_space<vmem>>, vector<50x640xf32>
    %cst_27 = arith.constant dense<0.000000e+00> : vector<4x640xf32>
    %69 = tpu.matmul %12, %68, %cst_27 {dimension_numbers = #tpu.dot_dimension_numbers<[1], [0], [0], [1], [0, 0, 1, 1], [], []>} : vector<4x50xf32>, vector<50x640xf32>, vector<4x640xf32> -> vector<4x640xf32>
    %c0_28 = arith.constant 0 : index
    %c1920_29 = arith.constant 1920 : index
    %70 = vector.load %arg5[%c0_28, %c1920_29] : memref<1x3328xf32, #tpu.memory_space<vmem>>, vector<1x640xf32>
    %71 = vector.broadcast %70 : vector<1x640xf32> to vector<4x640xf32>
    %72 = arith.addf %69, %71 : vector<4x640xf32>
    %cst_30 = arith.constant 5.000000e-01 : f32
    %73 = vector.broadcast %cst_30 : f32 to vector<4x640xf32>
    %74 = arith.mulf %73, %72 : vector<4x640xf32>
    %75 = math.tanh %74 : vector<4x640xf32>
    %cst_31 = arith.constant 5.000000e-01 : f32
    %76 = vector.broadcast %cst_31 : f32 to vector<4x640xf32>
    %77 = arith.mulf %76, %75 : vector<4x640xf32>
    %cst_32 = arith.constant 5.000000e-01 : f32
    %78 = vector.broadcast %cst_32 : f32 to vector<4x640xf32>
    %79 = arith.addf %77, %78 : vector<4x640xf32>
    %cst_33 = arith.constant 8.000000e-01 : f32
    %80 = vector.broadcast %cst_33 : f32 to vector<4x640xf32>
    %81 = arith.mulf %79, %80 : vector<4x640xf32>
    %82 = vector.extract_strided_slice %81 {offsets = [0, 0], sizes = [4, 625], strides = [1, 1]} : vector<4x640xf32> to vector<4x625xf32>
    %c0_34 = arith.constant 0 : index
    %c0_35 = arith.constant 0 : index
    %83 = vector.load %arg8[%c0_34, %c0_35] : memref<4x625xf32, #tpu.memory_space<vmem>>, vector<4x625xf32>
    tpu.vector_store %arg8[%c0_34, %c0_35], %82 {strides = array<i32>} : memref<4x625xf32, #tpu.memory_space<vmem>>, vector<4x625xf32>,
    %c0_36 = arith.constant 0 : index
    %c2560 = arith.constant 2560 : index
    %84 = vector.load %arg4[%c0_36, %c2560] : memref<50x3328xf32, #tpu.memory_space<vmem>>, vector<50x384xf32>
    %cst_37 = arith.constant dense<0.000000e+00> : vector<4x384xf32>
    %85 = tpu.matmul %12, %84, %cst_37 {dimension_numbers = #tpu.dot_dimension_numbers<[1], [0], [0], [1], [0, 0, 1, 1], [], []>} : vector<4x50xf32>, vector<50x384xf32>, vector<4x384xf32> -> vector<4x384xf32>
    %c0_38 = arith.constant 0 : index
    %c2560_39 = arith.constant 2560 : index
    %86 = vector.load %arg5[%c0_38, %c2560_39] : memref<1x3328xf32, #tpu.memory_space<vmem>>, vector<1x384xf32>
    %87 = vector.broadcast %86 : vector<1x384xf32> to vector<4x384xf32>
    %88 = arith.addf %85, %87 : vector<4x384xf32>
    %89 = vector.extract_strided_slice %88 {offsets = [0, 0], sizes = [4, 305], strides = [1, 1]} : vector<4x384xf32> to vector<4x305xf32>
    %c0_40 = arith.constant 0 : index
    %c0_41 = arith.constant 0 : index
    %90 = vector.load %arg9[%c0_40, %c0_41] : memref<4x305xf32, #tpu.memory_space<vmem>>, vector<4x305xf32>
    tpu.vector_store %arg9[%c0_40, %c0_41], %89 {strides = array<i32>} : memref<4x305xf32, #tpu.memory_space<vmem>>, vector<4x305xf32>,
    %c0_42 = arith.constant 0 : index
    %c2944 = arith.constant 2944 : index
    %91 = vector.load %arg4[%c0_42, %c2944] : memref<50x3328xf32, #tpu.memory_space<vmem>>, vector<50x384xf32>
    %cst_43 = arith.constant dense<0.000000e+00> : vector<4x384xf32>
    %92 = tpu.matmul %12, %91, %cst_43 {dimension_numbers = #tpu.dot_dimension_numbers<[1], [0], [0], [1], [0, 0, 1, 1], [], []>} : vector<4x50xf32>, vector<50x384xf32>, vector<4x384xf32> -> vector<4x384xf32>
    %c0_44 = arith.constant 0 : index
    %c2944_45 = arith.constant 2944 : index
    %93 = vector.load %arg5[%c0_44, %c2944_45] : memref<1x3328xf32, #tpu.memory_space<vmem>>, vector<1x384xf32>
    %94 = vector.broadcast %93 : vector<1x384xf32> to vector<4x384xf32>
    %95 = arith.addf %92, %94 : vector<4x384xf32>
    %cst_46 = arith.constant 0.000000e+00 : f32
    %96 = vector.broadcast %cst_46 : f32 to vector<4x384xf32>
    %97 = arith.maximumf %95, %96 : vector<4x384xf32>
    %98 = math.absf %95 : vector<4x384xf32>
    %cst_47 = arith.constant 0.000000e+00 : f32
    %99 = vector.broadcast %cst_47 : f32 to vector<4x384xf32>
    %100 = arith.subf %99, %98 : vector<4x384xf32>
    %101 = math.exp %100 : vector<4x384xf32>
    %cst_48 = arith.constant 1.000000e+00 : f32
    %102 = vector.broadcast %cst_48 : f32 to vector<4x384xf32>
    %103 = arith.addf %102, %101 : vector<4x384xf32>
    %104 = math.log %103 : vector<4x384xf32>
    %105 = arith.addf %97, %104 : vector<4x384xf32>
    %106 = vector.extract_strided_slice %105 {offsets = [0, 0], sizes = [4, 305], strides = [1, 1]} : vector<4x384xf32> to vector<4x305xf32>
    %c0_49 = arith.constant 0 : index
    %c0_50 = arith.constant 0 : index
    %107 = vector.load %arg10[%c0_49, %c0_50] : memref<4x305xf32, #tpu.memory_space<vmem>>, vector<4x305xf32>
    tpu.vector_store %arg10[%c0_49, %c0_50], %106 {strides = array<i32>} : memref<4x305xf32, #tpu.memory_space<vmem>>, vector<4x305xf32>,
    return
  }
  func.func @transform_0(%arg0: i32) -> (i32, i32) {
    %c0_i32 = arith.constant 0 : i32
    %c0_i32_0 = arith.constant 0 : i32
    return %arg0, %c0_i32 : i32, i32
  }
  func.func @transform_1(%arg0: i32) -> (i32, i32) {
    %c0_i32 = arith.constant 0 : i32
    %c0_i32_0 = arith.constant 0 : i32
    %c0_i32_1 = arith.constant 0 : i32
    return %c0_i32, %c0_i32_0 : i32, i32
  }
  func.func @transform_2(%arg0: i32) -> (i32, i32) {
    %c0_i32 = arith.constant 0 : i32
    %c0_i32_0 = arith.constant 0 : i32
    %c0_i32_1 = arith.constant 0 : i32
    return %c0_i32, %c0_i32_0 : i32, i32
  }
  func.func @transform_3(%arg0: i32) -> (i32, i32) {
    %c0_i32 = arith.constant 0 : i32
    %c0_i32_0 = arith.constant 0 : i32
    %c0_i32_1 = arith.constant 0 : i32
    return %c0_i32, %c0_i32_0 : i32, i32
  }
  func.func @transform_4(%arg0: i32) -> (i32, i32) {
    %c0_i32 = arith.constant 0 : i32
    %c0_i32_0 = arith.constant 0 : i32
    %c0_i32_1 = arith.constant 0 : i32
    return %c0_i32, %c0_i32_0 : i32, i32
  }
  func.func @transform_5(%arg0: i32) -> (i32, i32) {
    %c0_i32 = arith.constant 0 : i32
    %c0_i32_0 = arith.constant 0 : i32
    return %arg0, %c0_i32 : i32, i32
  }
  func.func @transform_6(%arg0: i32) -> (i32, i32) {
    %c0_i32 = arith.constant 0 : i32
    %c0_i32_0 = arith.constant 0 : i32
    return %arg0, %c0_i32 : i32, i32
  }
  func.func @transform_7(%arg0: i32) -> (i32, i32) {
    %c0_i32 = arith.constant 0 : i32
    %c0_i32_0 = arith.constant 0 : i32
    return %arg0, %c0_i32 : i32, i32
  }
  func.func @transform_8(%arg0: i32) -> (i32, i32) {
    %c0_i32 = arith.constant 0 : i32
    %c0_i32_0 = arith.constant 0 : i32
    return %arg0, %c0_i32 : i32, i32
  }
  func.func @transform_9(%arg0: i32) -> (i32, i32) {
    %c0_i32 = arith.constant 0 : i32
    %c0_i32_0 = arith.constant 0 : i32
    return %arg0, %c0_i32 : i32, i32
  }
}

</mosaic_0001>

<llo_original>
// kernel: _mdn_forward_impl.1
$region0: #{_mdn_forward_impl.1}
  #allocation0 [shape = 'u32[]', space=smem, size = 0x4, offset = 0x4, fixed_abs, tag = 'smem constant byte address 0x4 - core index']
  #allocation1 [shape = 'u32[72,128]{1,0:T(1,128)}', space=vmem, size = 0x9000, scoped, tag = 'internal scratch']
  %s0 = inlined_call_operand.vmem [shape: f32[4,186], index: 0, kind: input, shape index: {}]
  %s1 = inlined_call_operand.vmem [shape: f32[186,50], index: 1, kind: input, shape index: {}]
  %s2 = inlined_call_operand.vmem [shape: f32[1,50], index: 2, kind: input, shape index: {}]
  %s3 = inlined_call_operand.hbm [shape: f32[50,3328], index: 3, kind: input, shape index: {}]
  %s4 = inlined_call_operand.vmem [shape: f32[1,3328], index: 4, kind: input, shape index: {}]
  %s5 = inlined_call_operand.vmem [shape: f32[4,930], index: 5, kind: output, shape index: {0}]
  %s6 = inlined_call_operand.vmem [shape: f32[4,625], index: 6, kind: output, shape index: {1}]
  %s7 = inlined_call_operand.vmem [shape: f32[4,625], index: 7, kind: output, shape index: {2}]
  %s8 = inlined_call_operand.vmem [shape: f32[4,305], index: 8, kind: output, shape index: {3}]
  %s9 = inlined_call_operand.vmem [shape: f32[4,305], index: 9, kind: output, shape index: {4}]
  %10 = xla_tuple %s5, %s6, %s7, %s8, %s9
  %s11 = sld [smem:[#allocation0]]
  $region66: #{_mdn_forward_impl.1} parent=0
    _
  %s13 = ssub.s32 1, %s11
  %s14 = scalar_select 0, %s13, %s11
  $region1: #{_mdn_forward_impl.1} parent=0
    #allocation2 [shape = 'u8[745472]{0}', space=vmem, size = 0xb6000, scoped, tag = 'input window, operand 3, single buffered']
    #allocation3 [shape = 's32[1]{0}', space=sflag, size = 0x4, scoped, tag = 'scoped memory for _mdn_forward_impl.1']
    %15 = vsyncpa [#allocation3], 0
    // Predicated region
    $region2: #{_mdn_forward_impl.1} parent=1 // pred_check
      _
    $region3: #{_mdn_forward_impl.1} parent=1 // pred_check_branch
      %17 = sbr.rel (0) target = $region5
    $region4: #{_mdn_forward_impl.1} parent=1 // pred_region
      _
    $region5: #{_mdn_forward_impl.1} parent=1 // pred_fallthru
      _
    // Predicated region
    $region6: #{_mdn_forward_impl.1} parent=1 // pred_check
      _
    $region7: #{_mdn_forward_impl.1} parent=1 // pred_check_branch
      %19 = sbr.rel (0) target = $region9
    $region8: #{_mdn_forward_impl.1} parent=1 // pred_region
      _
    $region9: #{_mdn_forward_impl.1} parent=1 // pred_fallthru
      _
    // Predicated region
    $region10: #{_mdn_forward_impl.1} parent=1 // pred_check
      _
    $region11: #{_mdn_forward_impl.1} parent=1 // pred_check_branch
      %21 = sbr.rel (0) target = $region13
    $region12: #{_mdn_forward_impl.1} parent=1 // pred_region
      _
    $region13: #{_mdn_forward_impl.1} parent=1 // pred_fallthru
      _
    // Predicated region
    $region14: #{_mdn_forward_impl.1} parent=1 // pred_check
      _
    $region15: #{_mdn_forward_impl.1} parent=1 // pred_check_branch
      %23 = sbr.rel (0) target = $region17
    $region16: #{_mdn_forward_impl.1} parent=1 // pred_region
      %25 = vsyncadd [#allocation3], 0
      %s26 = sshll.u32 %s3, 4
      %s27 = int_to_ptr.hbm [resolvable:$true] %s26
      %s28 = sshll.u32 [#allocation2], 4
      %s29 = int_to_ptr.vmem [resolvable:$true] %s28
      %34 = dma.hbm_to_vmem [thread:$0]  %s27, 23296, %s29, [#allocation3], 3328, 3328, 208
    $region17: #{_mdn_forward_impl.1} parent=1 // pred_fallthru
      _
    // Predicated region
    $region18: #{_mdn_forward_impl.1} parent=1 // pred_check
      _
    $region19: #{_mdn_forward_impl.1} parent=1 // pred_check_branch
      %36 = sbr.rel (0) target = $region21
    $region20: #{_mdn_forward_impl.1} parent=1 // pred_region
      _
    $region21: #{_mdn_forward_impl.1} parent=1 // pred_fallthru
      _
    // Predicated region
    $region22: #{_mdn_forward_impl.1} parent=1 // pred_check
      _
    $region23: #{_mdn_forward_impl.1} parent=1 // pred_check_branch
      %38 = sbr.rel (0) target = $region25
    $region24: #{_mdn_forward_impl.1} parent=1 // pred_region
      %40 = dma.done [#allocation3], 23296
    $region25: #{_mdn_forward_impl.1} parent=1 // pred_fallthru
      _
    %v41 = vld [vmem:[%s0] sm:$0xff]
    %v42 = vld [vmem:[%s1] sm:$0xff]
    %v43 = vld [vmem:[%s1 + $0x8] sm:$0xff]
    %v44 = vld [vmem:[%s1 + $0x10] sm:$0xff]
    %v45 = vld [vmem:[%s1 + $0x18] sm:$0xff]
    %v46 = vld [vmem:[%s1 + $0x20] sm:$0xff]
    %v47 = vld [vmem:[%s1 + $0x28] sm:$0xff]
    %v48 = vld [vmem:[%s1 + $0x30] sm:$0xff]
    %v49 = vld [vmem:[%s1 + $0x38] sm:$0xff]
    %v50 = vld [vmem:[%s1 + $0x40] sm:$0xff]
    %v51 = vld [vmem:[%s1 + $0x48] sm:$0xff]
    %v52 = vld [vmem:[%s1 + $0x50] sm:$0xff]
    %v53 = vld [vmem:[%s1 + $0x58] sm:$0xff]
    %v54 = vld [vmem:[%s1 + $0x60] sm:$0xff]
    %v55 = vld [vmem:[%s1 + $0x68] sm:$0xff]
    %v56 = vld [vmem:[%s1 + $0x70] sm:$0xff]
    %v57 = vld [vmem:[%s1 + $0x78] sm:$0xff]
    %v58 = vld [vmem:[%s1 + $0x80] sm:$0xff]
    %v59 = vld [vmem:[%s1 + $0x88] sm:$0xff]
    %v60 = vld [vmem:[%s1 + $0x90] sm:$0xff]
    %v61 = vld [vmem:[%s1 + $0x98] sm:$0xff]
    %v62 = vld [vmem:[%s1 + $0xa0] sm:$0xff]
    %v63 = vld [vmem:[%s1 + $0xa8] sm:$0xff]
    %v64 = vld [vmem:[%s1 + $0xb0] sm:$0xff]
    %v65 = vld [vmem:[%s1 + $0xb8] sm:$0x3]
    %v66 = vld [vmem:[%s2] sm:$0x1]
    %v68 = vperm.slane %v66, 0
    %71 = vst [vmem:[#allocation1] ss:$2 sm:$0xff] %v41
    %v72 = vld.sshfl [vmem:[#allocation1] sm:$0xff pattern:$0x75316420]
    %v73 = vld.sshfl [vmem:[#allocation1 + $0x8] sm:$0xff pattern:$0x75316420]
    %vm75 = vcmask 474112
    %v76 = vsel %vm75, %v73, 0
    %vm78 = vcmask 1041408
    %v80 = vsel %vm78, %v65, 0
    %82 = vmatpush.msra.mxu0 %v57
    %83 = vmatpush.msra.mxu0 %v56
    %84 = vmatpush.msra.mxu0 %v55
    %85 = vmatpush.msra.mxu0 %v54
    %86 = vmatpush.msra.mxu0 %v53
    %87 = vmatpush.msra.mxu0 %v52
    %88 = vmatpush.msra.mxu0 %v51
    %89 = vmatpush.msra.mxu0 %v50
    %90 = vmatpush.msra.mxu0 %v49
    %91 = vmatpush.msra.mxu0 %v48
    %92 = vmatpush.msra.mxu0 %v47
    %93 = vmatpush.msra.mxu0 %v46
    %94 = vmatpush.msra.mxu0 %v45
    %95 = vmatpush.msra.mxu0 %v44
    %96 = vmatpush.msra.mxu0 %v43
    %97 = vmatpush.msra.mxu0 %v42
    %98 = vmatmul.f32.gmra.mxu0 %v72
    %v99 = vpop.f32.mrf.mxu0
    %v100 = vadd.f32 %v68, %v99
    %101 = vdwg.mxu0
    %102 = vmatpush.msra.mxu0 0.0
    %103 = vmatpush.msra.mxu0 0.0
    %104 = vmatpush.msra.mxu0 0.0
    %105 = vmatpush.msra.mxu0 0.0
    %106 = vmatpush.msra.mxu0 0.0
    %107 = vmatpush.msra.mxu0 0.0
    %108 = vmatpush.msra.mxu0 0.0
    %109 = vmatpush.msra.mxu0 0.0
    %110 = vmatpush.msra.mxu0 %v80
    %111 = vmatpush.msra.mxu0 %v64
    %112 = vmatpush.msra.mxu0 %v63
    %113 = vmatpush.msra.mxu0 %v62
    %114 = vmatpush.msra.mxu0 %v61
    %115 = vmatpush.msra.mxu0 %v60
    %116 = vmatpush.msra.mxu0 %v59
    %117 = vmatpush.msra.mxu0 %v58
    %118 = vmatmul.f32.gmra.mxu0 %v76
    %v119 = vpop.f32.mrf.mxu0
    %v120 = vadd.f32 %v100, %v119
    %121 = vdwg.mxu0
    %v122 = vmul.f32 %v120, 0.5
    %v123 = vtanh.pop %v122
    %v124 = vmul.f32 %v123, 0.5
    %v125 = vadd.f32 %v124, 0.5
    %v126 = vld [vmem:[#allocation2] sm:$0xff]
    %v127 = vld [vmem:[#allocation2 + $0x8] sm:$0xff]
    %v128 = vld [vmem:[#allocation2 + $0x10] sm:$0xff]
    %v129 = vld [vmem:[#allocation2 + $0x18] sm:$0xff]
    %v130 = vld [vmem:[#allocation2 + $0x20] sm:$0xff]
    %v131 = vld [vmem:[#allocation2 + $0x28] sm:$0xff]
    %v132 = vld [vmem:[#allocation2 + $0x30] sm:$0xff]
    %v133 = vld [vmem:[#allocation2 + $0x38] sm:$0xff]
    %v134 = vld [vmem:[#allocation2 + $0x40] sm:$0xff]
    %v135 = vld [vmem:[#allocation2 + $0x48] sm:$0xff]
    %v136 = vld [vmem:[#allocation2 + $0xd0] sm:$0xff]
    %v137 = vld [vmem:[#allocation2 + $0xd8] sm:$0xff]
    %v138 = vld [vmem:[#allocation2 + $0xe0] sm:$0xff]
    %v139 = vld [vmem:[#allocation2 + $0xe8] sm:$0xff]
    %v140 = vld [vmem:[#allocation2 + $0xf0] sm:$0xff]
    %v141 = vld [vmem:[#allocation2 + $0xf8] sm:$0xff]
    %v142 = vld [vmem:[#allocation2 + $0x100] sm:$0xff]
    %v143 = vld [vmem:[#allocation2 + $0x108] sm:$0xff]
    %v144 = vld [vmem:[#allocation2 + $0x110] sm:$0xff]
    %v145 = vld [vmem:[#allocation2 + $0x118] sm:$0xff]
    %v146 = vld [vmem:[#allocation2 + $0x1a0] sm:$0xff]
    %v147 = vld [vmem:[#allocation2 + $0x1a8] sm:$0xff]
    %v148 = vld [vmem:[#allocation2 + $0x1b0] sm:$0xff]
    %v149 = vld [vmem:[#allocation2 + $0x1b8] sm:$0xff]
    %v150 = vld [vmem:[#allocation2 + $0x1c0] sm:$0xff]
    %v151 = vld [vmem:[#allocation2 + $0x1c8] sm:$0xff]
    %v152 = vld [vmem:[#allocation2 + $0x1d0] sm:$0xff]
    %v153 = vld [vmem:[#allocation2 + $0x1d8] sm:$0xff]
    %v154 = vld [vmem:[#allocation2 + $0x1e0] sm:$0xff]
    %v155 = vld [vmem:[#allocation2 + $0x1e8] sm:$0xff]
    %v156 = vld [vmem:[#allocation2 + $0x270] sm:$0xff]
    %v157 = vld [vmem:[#allocation2 + $0x278] sm:$0xff]
    %v158 = vld [vmem:[#allocation2 + $0x280] sm:$0xff]
    %v159 = vld [vmem:[#allocation2 + $0x288] sm:$0xff]
    %v160 = vld [vmem:[#allocation2 + $0x290] sm:$0xff]
    %v161 = vld [vmem:[#allocation2 + $0x298] sm:$0xff]
    %v162 = vld [vmem:[#allocation2 + $0x2a0] sm:$0xff]
    %v163 = vld [vmem:[#allocation2 + $0x2a8] sm:$0xff]
    %v164 = vld [vmem:[#allocation2 + $0x2b0] sm:$0xff]
    %v165 = vld [vmem:[#allocation2 + $0x2b8] sm:$0xff]
    %v166 = vld [vmem:[#allocation2 + $0x340] sm:$0xff]
    %v167 = vld [vmem:[#allocation2 + $0x348] sm:$0xff]
    %v168 = vld [vmem:[#allocation2 + $0x350] sm:$0xff]
    %v169 = vld [vmem:[#allocation2 + $0x358] sm:$0xff]
    %v170 = vld [vmem:[#allocation2 + $0x360] sm:$0xff]
    %v171 = vld [vmem:[#allocation2 + $0x368] sm:$0xff]
    %v172 = vld [vmem:[#allocation2 + $0x370] sm:$0xff]
    %v173 = vld [vmem:[#allocation2 + $0x378] sm:$0xff]
    %v174 = vld [vmem:[#allocation2 + $0x380] sm:$0xff]
    %v175 = vld [vmem:[#allocation2 + $0x388] sm:$0xff]
    %v176 = vld [vmem:[#allocation2 + $0x410] sm:$0xff]
    %v177 = vld [vmem:[#allocation2 + $0x418] sm:$0xff]
    %v178 = vld [vmem:[#allocation2 + $0x420] sm:$0xff]
    %v179 = vld [vmem:[#allocation2 + $0x428] sm:$0xff]
    %v180 = vld [vmem:[#allocation2 + $0x430] sm:$0xff]
    %v181 = vld [vmem:[#allocation2 + $0x438] sm:$0xff]
    %v182 = vld [vmem:[#allocation2 + $0x440] sm:$0xff]
    %v183 = vld [vmem:[#allocation2 + $0x448] sm:$0xff]
    %v184 = vld [vmem:[#allocation2 + $0x450] sm:$0xff]
    %v185 = vld [vmem:[#allocation2 + $0x458] sm:$0xff]
    %v186 = vld [vmem:[#allocation2 + $0x4e0] sm:$0x3]
    %v187 = vld [vmem:[#allocation2 + $0x4e8] sm:$0x3]
    %v188 = vld [vmem:[#allocation2 + $0x4f0] sm:$0x3]
    %v189 = vld [vmem:[#allocation2 + $0x4f8] sm:$0x3]
    %v190 = vld [vmem:[#allocation2 + $0x500] sm:$0x3]
    %v191 = vld [vmem:[#allocation2 + $0x508] sm:$0x3]
    %v192 = vld [vmem:[#allocation2 + $0x510] sm:$0x3]
    %v193 = vld [vmem:[#allocation2 + $0x518] sm:$0x3]
    %v194 = vld [vmem:[#allocation2 + $0x520] sm:$0x3]
    %v195 = vld [vmem:[#allocation2 + $0x528] sm:$0x3]
    %v196 = vld [vmem:[%s4] sm:$0xff]
    %v197 = vld [vmem:[%s4 + $0x8] sm:$0x3]
    %v200 = vperm.slane %v196, 0
    %v201 = vperm.slane %v196, 1
    %v202 = vperm.slane %v196, 2
    %v203 = vperm.slane %v196, 3
    %v204 = vperm.slane %v196, 4
    %v205 = vperm.slane %v196, 5
    %v206 = vperm.slane %v196, 6
    %v207 = vperm.slane %v196, 7
    %v208 = vperm.slane %v197, 0
    %v209 = vperm.slane %v197, 1
    %vm220 = vcmask 408576
    %v222 = vsel %vm220, %v125, 0
    %v225 = vsel %vm78, %v186, 0
    %v228 = vsel %vm78, %v187, 0
    %v231 = vsel %vm78, %v188, 0
    %v234 = vsel %vm78, %v189, 0
    %v237 = vsel %vm78, %v190, 0
    %v240 = vsel %vm78, %v191, 0
    %v243 = vsel %vm78, %v192, 0
    %v246 = vsel %vm78, %v193, 0
    %v249 = vsel %vm78, %v194, 0
    %v252 = vsel %vm78, %v195, 0
    %254 = vmatpush.msra.mxu0 0.0
    %255 = vmatpush.msra.mxu0 0.0
    %256 = vmatpush.msra.mxu0 0.0
    %257 = vmatpush.msra.mxu0 0.0
    %258 = vmatpush.msra.mxu0 0.0
    %259 = vmatpush.msra.mxu0 0.0
    %260 = vmatpush.msra.mxu0 0.0
    %261 = vmatpush.msra.mxu0 0.0
    %262 = vmatpush.msra.mxu0 0.0
    %263 = vmatpush.msra.mxu0 %v225
    %264 = vmatpush.msra.mxu0 %v176
    %265 = vmatpush.msra.mxu0 %v166
    %266 = vmatpush.msra.mxu0 %v156
    %267 = vmatpush.msra.mxu0 %v146
    %268 = vmatpush.msra.mxu0 %v136
    %269 = vmatpush.msra.mxu0 %v126
    %270 = vmatmul.f32.gmra.mxu0 %v222
    %v271 = vpop.f32.mrf.mxu0
    %v272 = vadd.f32 %v200, %v271
    %273 = vdwg.mxu0
    %274 = vmatpush.msra.mxu0 0.0
    %275 = vmatpush.msra.mxu0 0.0
    %276 = vmatpush.msra.mxu0 0.0
    %277 = vmatpush.msra.mxu0 0.0
    %278 = vmatpush.msra.mxu0 0.0
    %279 = vmatpush.msra.mxu0 0.0
    %280 = vmatpush.msra.mxu0 0.0
    %281 = vmatpush.msra.mxu0 0.0
    %282 = vmatpush.msra.mxu0 0.0
    %283 = vmatpush.msra.mxu0 %v228
    %284 = vmatpush.msra.mxu0 %v177
    %285 = vmatpush.msra.mxu0 %v167
    %286 = vmatpush.msra.mxu0 %v157
    %287 = vmatpush.msra.mxu0 %v147
    %288 = vmatpush.msra.mxu0 %v137
    %289 = vmatpush.msra.mxu0 %v127
    %290 = vmatmul.f32.gmra.mxu0 %v222
    %v291 = vpop.f32.mrf.mxu0
    %v292 = vadd.f32 %v201, %v291
    %293 = vdwg.mxu0
    %294 = vmatpush.msra.mxu0 0.0
    %295 = vmatpush.msra.mxu0 0.0
    %296 = vmatpush.msra.mxu0 0.0
    %297 = vmatpush.msra.mxu0 0.0
    %298 = vmatpush.msra.mxu0 0.0
    %299 = vmatpush.msra.mxu0 0.0
    %300 = vmatpush.msra.mxu0 0.0
    %301 = vmatpush.msra.mxu0 0.0
    %302 = vmatpush.msra.mxu0 0.0
    %303 = vmatpush.msra.mxu0 %v231
    %304 = vmatpush.msra.mxu0 %v178
    %305 = vmatpush.msra.mxu0 %v168
    %306 = vmatpush.msra.mxu0 %v158
    %307 = vmatpush.msra.mxu0 %v148
    %308 = vmatpush.msra.mxu0 %v138
    %309 = vmatpush.msra.mxu0 %v128
    %310 = vmatmul.f32.gmra.mxu0 %v222
    %v311 = vpop.f32.mrf.mxu0
    %v312 = vadd.f32 %v202, %v311
    %313 = vdwg.mxu0
    %314 = vmatpush.msra.mxu0 0.0
    %315 = vmatpush.msra.mxu0 0.0
    %316 = vmatpush.msra.mxu0 0.0
    %317 = vmatpush.msra.mxu0 0.0
    %318 = vmatpush.msra.mxu0 0.0
    %319 = vmatpush.msra.mxu0 0.0
    %320 = vmatpush.msra.mxu0 0.0
    %321 = vmatpush.msra.mxu0 0.0
    %322 = vmatpush.msra.mxu0 0.0
    %323 = vmatpush.msra.mxu0 %v234
    %324 = vmatpush.msra.mxu0 %v179
    %325 = vmatpush.msra.mxu0 %v169
    %326 = vmatpush.msra.mxu0 %v159
    %327 = vmatpush.msra.mxu0 %v149
    %328 = vmatpush.msra.mxu0 %v139
    %329 = vmatpush.msra.mxu0 %v129
    %330 = vmatmul.f32.gmra.mxu0 %v222
    %v331 = vpop.f32.mrf.mxu0
    %v332 = vadd.f32 %v203, %v331
    %333 = vdwg.mxu0
    %334 = vmatpush.msra.mxu0 0.0
    %335 = vmatpush.msra.mxu0 0.0
    %336 = vmatpush.msra.mxu0 0.0
    %337 = vmatpush.msra.mxu0 0.0
    %338 = vmatpush.msra.mxu0 0.0
    %339 = vmatpush.msra.mxu0 0.0
    %340 = vmatpush.msra.mxu0 0.0
    %341 = vmatpush.msra.mxu0 0.0
    %342 = vmatpush.msra.mxu0 0.0
    %343 = vmatpush.msra.mxu0 %v237
    %344 = vmatpush.msra.mxu0 %v180
    %345 = vmatpush.msra.mxu0 %v170
    %346 = vmatpush.msra.mxu0 %v160
    %347 = vmatpush.msra.mxu0 %v150
    %348 = vmatpush.msra.mxu0 %v140
    %349 = vmatpush.msra.mxu0 %v130
    %350 = vmatmul.f32.gmra.mxu0 %v222
    %v351 = vpop.f32.mrf.mxu0
    %v352 = vadd.f32 %v204, %v351
    %353 = vdwg.mxu0
    %354 = vmatpush.msra.mxu0 0.0
    %355 = vmatpush.msra.mxu0 0.0
    %356 = vmatpush.msra.mxu0 0.0
    %357 = vmatpush.msra.mxu0 0.0
    %358 = vmatpush.msra.mxu0 0.0
    %359 = vmatpush.msra.mxu0 0.0
    %360 = vmatpush.msra.mxu0 0.0
    %361 = vmatpush.msra.mxu0 0.0
    %362 = vmatpush.msra.mxu0 0.0
    %363 = vmatpush.msra.mxu0 %v240
    %364 = vmatpush.msra.mxu0 %v181
    %365 = vmatpush.msra.mxu0 %v171
    %366 = vmatpush.msra.mxu0 %v161
    %367 = vmatpush.msra.mxu0 %v151
    %368 = vmatpush.msra.mxu0 %v141
    %369 = vmatpush.msra.mxu0 %v131
    %370 = vmatmul.f32.gmra.mxu0 %v222
    %v371 = vpop.f32.mrf.mxu0
    %v372 = vadd.f32 %v205, %v371
    %373 = vdwg.mxu0
    %374 = vmatpush.msra.mxu0 0.0
    %375 = vmatpush.msra.mxu0 0.0
    %376 = vmatpush.msra.mxu0 0.0
    %377 = vmatpush.msra.mxu0 0.0
    %378 = vmatpush.msra.mxu0 0.0
    %379 = vmatpush.msra.mxu0 0.0
    %380 = vmatpush.msra.mxu0 0.0
    %381 = vmatpush.msra.mxu0 0.0
    %382 = vmatpush.msra.mxu0 0.0
    %383 = vmatpush.msra.mxu0 %v243
    %384 = vmatpush.msra.mxu0 %v182
    %385 = vmatpush.msra.mxu0 %v172
    %386 = vmatpush.msra.mxu0 %v162
    %387 = vmatpush.msra.mxu0 %v152
    %388 = vmatpush.msra.mxu0 %v142
    %389 = vmatpush.msra.mxu0 %v132
    %390 = vmatmul.f32.gmra.mxu0 %v222
    %v391 = vpop.f32.mrf.mxu0
    %v392 = vadd.f32 %v206, %v391
    %393 = vdwg.mxu0
    %394 = vmatpush.msra.mxu0 0.0
    %395 = vmatpush.msra.mxu0 0.0
    %396 = vmatpush.msra.mxu0 0.0
    %397 = vmatpush.msra.mxu0 0.0
    %398 = vmatpush.msra.mxu0 0.0
    %399 = vmatpush.msra.mxu0 0.0
    %400 = vmatpush.msra.mxu0 0.0
    %401 = vmatpush.msra.mxu0 0.0
    %402 = vmatpush.msra.mxu0 0.0
    %403 = vmatpush.msra.mxu0 %v246
    %404 = vmatpush.msra.mxu0 %v183
    %405 = vmatpush.msra.mxu0 %v173
    %406 = vmatpush.msra.mxu0 %v163
    %407 = vmatpush.msra.mxu0 %v153
    %408 = vmatpush.msra.mxu0 %v143
    %409 = vmatpush.msra.mxu0 %v133
    %410 = vmatmul.f32.gmra.mxu0 %v222
    %v411 = vpop.f32.mrf.mxu0
    %v412 = vadd.f32 %v207, %v411
    %413 = vdwg.mxu0
    %414 = vmatpush.msra.mxu0 0.0
    %415 = vmatpush.msra.mxu0 0.0
    %416 = vmatpush.msra.mxu0 0.0
    %417 = vmatpush.msra.mxu0 0.0
    %418 = vmatpush.msra.mxu0 0.0
    %419 = vmatpush.msra.mxu0 0.0
    %420 = vmatpush.msra.mxu0 0.0
    %421 = vmatpush.msra.mxu0 0.0
    %422 = vmatpush.msra.mxu0 0.0
    %423 = vmatpush.msra.mxu0 %v249
    %424 = vmatpush.msra.mxu0 %v184
    %425 = vmatpush.msra.mxu0 %v174
    %426 = vmatpush.msra.mxu0 %v164
    %427 = vmatpush.msra.mxu0 %v154
    %428 = vmatpush.msra.mxu0 %v144
    %429 = vmatpush.msra.mxu0 %v134
    %430 = vmatmul.f32.gmra.mxu0 %v222
    %v431 = vpop.f32.mrf.mxu0
    %v432 = vadd.f32 %v208, %v431
    %433 = vdwg.mxu0
    %434 = vmatpush.msra.mxu0 0.0
    %435 = vmatpush.msra.mxu0 0.0
    %436 = vmatpush.msra.mxu0 0.0
    %437 = vmatpush.msra.mxu0 0.0
    %438 = vmatpush.msra.mxu0 0.0
    %439 = vmatpush.msra.mxu0 0.0
    %440 = vmatpush.msra.mxu0 0.0
    %441 = vmatpush.msra.mxu0 0.0
    %442 = vmatpush.msra.mxu0 0.0
    %443 = vmatpush.msra.mxu0 %v252
    %444 = vmatpush.msra.mxu0 %v185
    %445 = vmatpush.msra.mxu0 %v175
    %446 = vmatpush.msra.mxu0 %v165
    %447 = vmatpush.msra.mxu0 %v155
    %448 = vmatpush.msra.mxu0 %v145
    %449 = vmatpush.msra.mxu0 %v135
    %450 = vmatmul.f32.gmra.mxu0 %v222
    %v451 = vpop.f32.mrf.mxu0
    %v452 = vadd.f32 %v209, %v451
    %453 = vdwg.mxu0
    %v454 = vmax.f32 %v272, %v312
    %v455 = vmax.f32 %v292, %v332
    %v456 = vmax.f32 %v454, %v352
    %v457 = vmax.f32 %v455, %v372
    %v458 = vmax.f32 %v456, %v392
    %v459 = vmax.f32 %v457, %v412
    %v460 = vmax.f32 %v458, %v432
    %v461 = vmax.f32 %v459, %v452
    %v462 = vsub.f32 %v272, %v460
    %v463 = vsub.f32 %v292, %v461
    %v464 = vmul.f32 %v462, 1.442695
    %v465 = vpow.pop %v464
    %v466 = vmul.f32 %v463, 1.442695
    %v467 = vpow.pop %v466
    %v468 = vsub.f32 %v312, %v460
    %v469 = vsub.f32 %v332, %v461
    %v470 = vmul.f32 %v468, 1.442695
    %v471 = vpow.pop %v470
    %v472 = vmul.f32 %v469, 1.442695
    %v473 = vpow.pop %v472
    %v474 = vsub.f32 %v352, %v460
    %v475 = vsub.f32 %v372, %v461
    %v476 = vmul.f32 %v474, 1.442695
    %v477 = vpow.pop %v476
    %v478 = vmul.f32 %v475, 1.442695
    %v479 = vpow.pop %v478
    %v480 = vsub.f32 %v392, %v460
    %v481 = vsub.f32 %v412, %v461
    %v482 = vmul.f32 %v480, 1.442695
    %v483 = vpow.pop %v482
    %v484 = vmul.f32 %v481, 1.442695
    %v485 = vpow.pop %v484
    %v486 = vsub.f32 %v432, %v460
    %v487 = vsub.f32 %v452, %v461
    %v488 = vmul.f32 %v486, 1.442695
    %v489 = vpow.pop %v488
    %v490 = vmul.f32 %v487, 1.442695
    %v491 = vpow.pop %v490
    %v492 = vadd.f32 %v465, %v471
    %v493 = vadd.f32 %v467, %v473
    %v494 = vadd.f32 %v492, %v477
    %v495 = vadd.f32 %v493, %v479
    %v496 = vadd.f32 %v494, %v483
    %v497 = vadd.f32 %v495, %v485
    %v498 = vadd.f32 %v496, %v489
    %v499 = vadd.f32 %v497, %v491
    %v500 = vrcp.pop %v498
    %v501 = vrcp.pop %v499
    %v502 = vmul.f32 %v498, %v500
    %v503 = vmul.f32 %v499, %v501
    %v504 = vsub.f32 2.0, %v502
    %v505 = vsub.f32 2.0, %v503
    %v506 = vmul.f32 %v500, %v504
    %v507 = vmul.f32 %v501, %v505
    %v508 = vmul.f32 %v465, %v506
    %v509 = vmul.f32 %v467, %v507
    %v512 = vrot.slane %v509, 4
    %vm513 = vcmask 1043456
    %v514 = vsel %vm513, %v508, %v512
    %vm516 = vcmask 474116
    %vm517 = vmor %vm516, %vm513
    %518 = vst.msk [vmem:[%s5] sm:$0xff] %vm517, %v514
    %v519 = vmul.f32 %v471, %v506
    %v520 = vmul.f32 %v473, %v507
    %v523 = vrot.slane %v520, 4
    %v524 = vsel %vm513, %v519, %v523
    %525 = vrot.lane.b32.xlu0 %v524, 58
    %v526 = vpop.permute.xlu0 %525
    %v527 = vrot.slane %v526, 4
    %v528 = vsel %vm75, %v527, %v526
    %vm530 = vcmask 1043920
    %vm531 = vcmask 949252
    %vm532 = vmor %vm531, %vm530
    %533 = vst.msk [vmem:[%s5 + $0x4] sm:$0xff] %vm532, %v528
    %v534 = vmul.f32 %v477, %v506
    %v535 = vmul.f32 %v479, %v507
    %v538 = vrot.slane %v535, 4
    %v539 = vsel %vm513, %v534, %v538
    %540 = vrot.lane.b32.xlu0 %v539, 116
    %v541 = vpop.permute.xlu0 %540
    %v542 = vrot.slane %v541, 4
    %vm543 = vcmask 949248
    %v544 = vsel %vm543, %v542, %v541
    %vm547 = vcmask 1044384
    %vm548 = vcmask 1047556
    %vm549 = vmor %vm548, %vm547
    %550 = vst.msk [vmem:[%s5 + $0x8] sm:$0xff] %vm549, %v544
    %vm551 = vcmask 371712
    %552 = vst.msk [vmem:[%s5 + $0x10] sm:$0xf] %vm551, %v542
    %v553 = vmul.f32 %v483, %v506
    %v554 = vmul.f32 %v485, %v507
    %v557 = vrot.slane %v554, 4
    %v558 = vsel %vm513, %v553, %v557
    %559 = vrot.lane.b32.xlu0 %v558, 46
    %v560 = vpop.permute.xlu0 %559
    %v561 = vrot.slane %v560, 4
    %vm562 = vcmask 375808
    %v563 = vsel %vm562, %v561, %v560
    %vm565 = vcmask 1043824
    %vm566 = vcmask 850948
    %vm567 = vmor %vm566, %vm565
    %568 = vst.msk [vmem:[%s5 + $0x10] sm:$0xff] %vm567, %v563
    %v569 = vmul.f32 %v489, %v506
    %v570 = vmul.f32 %v491, %v507
    %v573 = vrot.slane %v570, 4
    %v574 = vsel %vm513, %v569, %v573
    %575 = vrot.lane.b32.xlu0 %v574, 104
    %v576 = vpop.permute.xlu0 %575
    %v577 = vrot.slane %v576, 4
    %vm578 = vcmask 850944
    %v579 = vsel %vm578, %v577, %v576
    %vm582 = vcmask 1044288
    %vm583 = vmor %vm548, %vm582
    %584 = vst.msk [vmem:[%s5 + $0x14] sm:$0xff] %vm583, %v579
    %vm585 = vcmask 273408
    %586 = vst.msk [vmem:[%s5 + $0x1c] sm:$0xf] %vm585, %v577
    %v587 = vld [vmem:[#allocation2 + $0x50] sm:$0xff]
    %v588 = vld [vmem:[#allocation2 + $0x58] sm:$0xff]
    %v589 = vld [vmem:[#allocation2 + $0x60] sm:$0xff]
    %v590 = vld [vmem:[#allocation2 + $0x68] sm:$0xff]
    %v591 = vld [vmem:[#allocation2 + $0x70] sm:$0xff]
    %v592 = vld [vmem:[#allocation2 + $0x120] sm:$0xff]
    %v593 = vld [vmem:[#allocation2 + $0x128] sm:$0xff]
    %v594 = vld [vmem:[#allocation2 + $0x130] sm:$0xff]
    %v595 = vld [vmem:[#allocation2 + $0x138] sm:$0xff]
    %v596 = vld [vmem:[#allocation2 + $0x140] sm:$0xff]
    %v597 = vld [vmem:[#allocation2 + $0x1f0] sm:$0xff]
    %v598 = vld [vmem:[#allocation2 + $0x1f8] sm:$0xff]
    %v599 = vld [vmem:[#allocation2 + $0x200] sm:$0xff]
    %v600 = vld [vmem:[#allocation2 + $0x208] sm:$0xff]
    %v601 = vld [vmem:[#allocation2 + $0x210] sm:$0xff]
    %v602 = vld [vmem:[#allocation2 + $0x2c0] sm:$0xff]
    %v603 = vld [vmem:[#allocation2 + $0x2c8] sm:$0xff]
    %v604 = vld [vmem:[#allocation2 + $0x2d0] sm:$0xff]
    %v605 = vld [vmem:[#allocation2 + $0x2d8] sm:$0xff]
    %v606 = vld [vmem:[#allocation2 + $0x2e0] sm:$0xff]
    %v607 = vld [vmem:[#allocation2 + $0x390] sm:$0xff]
    %v608 = vld [vmem:[#allocation2 + $0x398] sm:$0xff]
    %v609 = vld [vmem:[#allocation2 + $0x3a0] sm:$0xff]
    %v610 = vld [vmem:[#allocation2 + $0x3a8] sm:$0xff]
    %v611 = vld [vmem:[#allocation2 + $0x3b0] sm:$0xff]
    %v612 = vld [vmem:[#allocation2 + $0x460] sm:$0xff]
    %v613 = vld [vmem:[#allocation2 + $0x468] sm:$0xff]
    %v614 = vld [vmem:[#allocation2 + $0x470] sm:$0xff]
    %v615 = vld [vmem:[#allocation2 + $0x478] sm:$0xff]
    %v616 = vld [vmem:[#allocation2 + $0x480] sm:$0xff]
    %v617 = vld [vmem:[#allocation2 + $0x530] sm:$0x3]
    %v618 = vld [vmem:[#allocation2 + $0x538] sm:$0x3]
    %v619 = vld [vmem:[#allocation2 + $0x540] sm:$0x3]
    %v620 = vld [vmem:[#allocation2 + $0x548] sm:$0x3]
    %v621 = vld [vmem:[#allocation2 + $0x550] sm:$0x3]
    %v622 = vld [vmem:[%s4 + $0xa] sm:$0x1f]
    %v624 = vperm.slane %v622, 0
    %v625 = vperm.slane %v622, 1
    %v626 = vperm.slane %v622, 2
    %v627 = vperm.slane %v622, 3
    %v628 = vperm.slane %v622, 4
    %v635 = vsel %vm78, %v617, 0
    %v638 = vsel %vm78, %v618, 0
    %v641 = vsel %vm78, %v619, 0
    %v644 = vsel %vm78, %v620, 0
    %v647 = vsel %vm78, %v621, 0
    %649 = vmatpush.msra.mxu0 0.0
    %650 = vmatpush.msra.mxu0 0.0
    %651 = vmatpush.msra.mxu0 0.0
    %652 = vmatpush.msra.mxu0 0.0
    %653 = vmatpush.msra.mxu0 0.0
    %654 = vmatpush.msra.mxu0 0.0
    %655 = vmatpush.msra.mxu0 0.0
    %656 = vmatpush.msra.mxu0 0.0
    %657 = vmatpush.msra.mxu0 0.0
    %658 = vmatpush.msra.mxu0 %v635
    %659 = vmatpush.msra.mxu0 %v612
    %660 = vmatpush.msra.mxu0 %v607
    %661 = vmatpush.msra.mxu0 %v602
    %662 = vmatpush.msra.mxu0 %v597
    %663 = vmatpush.msra.mxu0 %v592
    %664 = vmatpush.msra.mxu0 %v587
    %665 = vmatmul.f32.gmra.mxu0 %v222
    %v666 = vpop.f32.mrf.mxu0
    %v667 = vadd.f32 %v624, %v666
    %668 = vdwg.mxu0
    %669 = vmatpush.msra.mxu0 0.0
    %670 = vmatpush.msra.mxu0 0.0
    %671 = vmatpush.msra.mxu0 0.0
    %672 = vmatpush.msra.mxu0 0.0
    %673 = vmatpush.msra.mxu0 0.0
    %674 = vmatpush.msra.mxu0 0.0
    %675 = vmatpush.msra.mxu0 0.0
    %676 = vmatpush.msra.mxu0 0.0
    %677 = vmatpush.msra.mxu0 0.0
    %678 = vmatpush.msra.mxu0 %v638
    %679 = vmatpush.msra.mxu0 %v613
    %680 = vmatpush.msra.mxu0 %v608
    %681 = vmatpush.msra.mxu0 %v603
    %682 = vmatpush.msra.mxu0 %v598
    %683 = vmatpush.msra.mxu0 %v593
    %684 = vmatpush.msra.mxu0 %v588
    %685 = vmatmul.f32.gmra.mxu0 %v222
    %v686 = vpop.f32.mrf.mxu0
    %v687 = vadd.f32 %v625, %v686
    %688 = vdwg.mxu0
    %689 = vmatpush.msra.mxu0 0.0
    %690 = vmatpush.msra.mxu0 0.0
    %691 = vmatpush.msra.mxu0 0.0
    %692 = vmatpush.msra.mxu0 0.0
    %693 = vmatpush.msra.mxu0 0.0
    %694 = vmatpush.msra.mxu0 0.0
    %695 = vmatpush.msra.mxu0 0.0
    %696 = vmatpush.msra.mxu0 0.0
    %697 = vmatpush.msra.mxu0 0.0
    %698 = vmatpush.msra.mxu0 %v641
    %699 = vmatpush.msra.mxu0 %v614
    %700 = vmatpush.msra.mxu0 %v609
    %701 = vmatpush.msra.mxu0 %v604
    %702 = vmatpush.msra.mxu0 %v599
    %703 = vmatpush.msra.mxu0 %v594
    %704 = vmatpush.msra.mxu0 %v589
    %705 = vmatmul.f32.gmra.mxu0 %v222
    %v706 = vpop.f32.mrf.mxu0
    %v707 = vadd.f32 %v626, %v706
    %708 = vdwg.mxu0
    %709 = vmatpush.msra.mxu0 0.0
    %710 = vmatpush.msra.mxu0 0.0
    %711 = vmatpush.msra.mxu0 0.0
    %712 = vmatpush.msra.mxu0 0.0
    %713 = vmatpush.msra.mxu0 0.0
    %714 = vmatpush.msra.mxu0 0.0
    %715 = vmatpush.msra.mxu0 0.0
    %716 = vmatpush.msra.mxu0 0.0
    %717 = vmatpush.msra.mxu0 0.0
    %718 = vmatpush.msra.mxu0 %v644
    %719 = vmatpush.msra.mxu0 %v615
    %720 = vmatpush.msra.mxu0 %v610
    %721 = vmatpush.msra.mxu0 %v605
    %722 = vmatpush.msra.mxu0 %v600
    %723 = vmatpush.msra.mxu0 %v595
    %724 = vmatpush.msra.mxu0 %v590
    %725 = vmatmul.f32.gmra.mxu0 %v222
    %v726 = vpop.f32.mrf.mxu0
    %v727 = vadd.f32 %v627, %v726
    %728 = vdwg.mxu0
    %729 = vmatpush.msra.mxu0 0.0
    %730 = vmatpush.msra.mxu0 0.0
    %731 = vmatpush.msra.mxu0 0.0
    %732 = vmatpush.msra.mxu0 0.0
    %733 = vmatpush.msra.mxu0 0.0
    %734 = vmatpush.msra.mxu0 0.0
    %735 = vmatpush.msra.mxu0 0.0
    %736 = vmatpush.msra.mxu0 0.0
    %737 = vmatpush.msra.mxu0 0.0
    %738 = vmatpush.msra.mxu0 %v647
    %739 = vmatpush.msra.mxu0 %v616
    %740 = vmatpush.msra.mxu0 %v611
    %741 = vmatpush.msra.mxu0 %v606
    %742 = vmatpush.msra.mxu0 %v601
    %743 = vmatpush.msra.mxu0 %v596
    %744 = vmatpush.msra.mxu0 %v591
    %745 = vmatmul.f32.gmra.mxu0 %v222
    %v746 = vpop.f32.mrf.mxu0
    %v747 = vadd.f32 %v628, %v746
    %748 = vdwg.mxu0
    %v753 = vrot.slane %v687, 4
    %v754 = vrot.slane %v727, 4
    %v755 = vsel %vm513, %v667, %v753
    %v756 = vsel %vm513, %v707, %v754
    %759 = vst [vmem:[%s6] sm:$0xff] %v755
    %760 = vst [vmem:[%s6 + $0x8] sm:$0xff] %v756
    %vm761 = vcmask 920576
    %762 = vst.msk [vmem:[%s6 + $0x10] sm:$0xf] %vm761, %v747
    %v763 = vld [vmem:[#allocation2 + $0x78] sm:$0xff]
    %v764 = vld [vmem:[#allocation2 + $0x80] sm:$0xff]
    %v765 = vld [vmem:[#allocation2 + $0x88] sm:$0xff]
    %v766 = vld [vmem:[#allocation2 + $0x90] sm:$0xff]
    %v767 = vld [vmem:[#allocation2 + $0x98] sm:$0xff]
    %v768 = vld [vmem:[#allocation2 + $0x148] sm:$0xff]
    %v769 = vld [vmem:[#allocation2 + $0x150] sm:$0xff]
    %v770 = vld [vmem:[#allocation2 + $0x158] sm:$0xff]
    %v771 = vld [vmem:[#allocation2 + $0x160] sm:$0xff]
    %v772 = vld [vmem:[#allocation2 + $0x168] sm:$0xff]
    %v773 = vld [vmem:[#allocation2 + $0x218] sm:$0xff]
    %v774 = vld [vmem:[#allocation2 + $0x220] sm:$0xff]
    %v775 = vld [vmem:[#allocation2 + $0x228] sm:$0xff]
    %v776 = vld [vmem:[#allocation2 + $0x230] sm:$0xff]
    %v777 = vld [vmem:[#allocation2 + $0x238] sm:$0xff]
    %v778 = vld [vmem:[#allocation2 + $0x2e8] sm:$0xff]
    %v779 = vld [vmem:[#allocation2 + $0x2f0] sm:$0xff]
    %v780 = vld [vmem:[#allocation2 + $0x2f8] sm:$0xff]
    %v781 = vld [vmem:[#allocation2 + $0x300] sm:$0xff]
    %v782 = vld [vmem:[#allocation2 + $0x308] sm:$0xff]
    %v783 = vld [vmem:[#allocation2 + $0x3b8] sm:$0xff]
    %v784 = vld [vmem:[#allocation2 + $0x3c0] sm:$0xff]
    %v785 = vld [vmem:[#allocation2 + $0x3c8] sm:$0xff]
    %v786 = vld [vmem:[#allocation2 + $0x3d0] sm:$0xff]
    %v787 = vld [vmem:[#allocation2 + $0x3d8] sm:$0xff]
    %v788 = vld [vmem:[#allocation2 + $0x488] sm:$0xff]
    %v789 = vld [vmem:[#allocation2 + $0x490] sm:$0xff]
    %v790 = vld [vmem:[#allocation2 + $0x498] sm:$0xff]
    %v791 = vld [vmem:[#allocation2 + $0x4a0] sm:$0xff]
    %v792 = vld [vmem:[#allocation2 + $0x4a8] sm:$0xff]
    %v793 = vld [vmem:[#allocation2 + $0x558] sm:$0x3]
    %v794 = vld [vmem:[#allocation2 + $0x560] sm:$0x3]
    %v795 = vld [vmem:[#allocation2 + $0x568] sm:$0x3]
    %v796 = vld [vmem:[#allocation2 + $0x570] sm:$0x3]
    %v797 = vld [vmem:[#allocation2 + $0x578] sm:$0x3]
    %v798 = vld [vmem:[%s4 + $0xf] sm:$0x1f]
    %v800 = vperm.slane %v798, 0
    %v801 = vperm.slane %v798, 1
    %v802 = vperm.slane %v798, 2
    %v803 = vperm.slane %v798, 3
    %v804 = vperm.slane %v798, 4
    %v811 = vsel %vm78, %v793, 0
    %v814 = vsel %vm78, %v794, 0
    %v817 = vsel %vm78, %v795, 0
    %v820 = vsel %vm78, %v796, 0
    %v823 = vsel %vm78, %v797, 0
    %825 = vmatpush.msra.mxu0 0.0
    %826 = vmatpush.msra.mxu0 0.0
    %827 = vmatpush.msra.mxu0 0.0
    %828 = vmatpush.msra.mxu0 0.0
    %829 = vmatpush.msra.mxu0 0.0
    %830 = vmatpush.msra.mxu0 0.0
    %831 = vmatpush.msra.mxu0 0.0
    %832 = vmatpush.msra.mxu0 0.0
    %833 = vmatpush.msra.mxu0 0.0
    %834 = vmatpush.msra.mxu0 %v811
    %835 = vmatpush.msra.mxu0 %v788
    %836 = vmatpush.msra.mxu0 %v783
    %837 = vmatpush.msra.mxu0 %v778
    %838 = vmatpush.msra.mxu0 %v773
    %839 = vmatpush.msra.mxu0 %v768
    %840 = vmatpush.msra.mxu0 %v763
    %841 = vmatmul.f32.gmra.mxu0 %v222
    %v842 = vpop.f32.mrf.mxu0
    %v843 = vadd.f32 %v800, %v842
    %844 = vdwg.mxu0
    %845 = vmatpush.msra.mxu0 0.0
    %846 = vmatpush.msra.mxu0 0.0
    %847 = vmatpush.msra.mxu0 0.0
    %848 = vmatpush.msra.mxu0 0.0
    %849 = vmatpush.msra.mxu0 0.0
    %850 = vmatpush.msra.mxu0 0.0
    %851 = vmatpush.msra.mxu0 0.0
    %852 = vmatpush.msra.mxu0 0.0
    %853 = vmatpush.msra.mxu0 0.0
    %854 = vmatpush.msra.mxu0 %v814
    %855 = vmatpush.msra.mxu0 %v789
    %856 = vmatpush.msra.mxu0 %v784
    %857 = vmatpush.msra.mxu0 %v779
    %858 = vmatpush.msra.mxu0 %v774
    %859 = vmatpush.msra.mxu0 %v769
    %860 = vmatpush.msra.mxu0 %v764
    %861 = vmatmul.f32.gmra.mxu0 %v222
    %v862 = vpop.f32.mrf.mxu0
    %v863 = vadd.f32 %v801, %v862
    %864 = vdwg.mxu0
    %865 = vmatpush.msra.mxu0 0.0
    %866 = vmatpush.msra.mxu0 0.0
    %867 = vmatpush.msra.mxu0 0.0
    %868 = vmatpush.msra.mxu0 0.0
    %869 = vmatpush.msra.mxu0 0.0
    %870 = vmatpush.msra.mxu0 0.0
    %871 = vmatpush.msra.mxu0 0.0
    %872 = vmatpush.msra.mxu0 0.0
    %873 = vmatpush.msra.mxu0 0.0
    %874 = vmatpush.msra.mxu0 %v817
    %875 = vmatpush.msra.mxu0 %v790
    %876 = vmatpush.msra.mxu0 %v785
    %877 = vmatpush.msra.mxu0 %v780
    %878 = vmatpush.msra.mxu0 %v775
    %879 = vmatpush.msra.mxu0 %v770
    %880 = vmatpush.msra.mxu0 %v765
    %881 = vmatmul.f32.gmra.mxu0 %v222
    %v882 = vpop.f32.mrf.mxu0
    %v883 = vadd.f32 %v802, %v882
    %884 = vdwg.mxu0
    %885 = vmatpush.msra.mxu0 0.0
    %886 = vmatpush.msra.mxu0 0.0
    %887 = vmatpush.msra.mxu0 0.0
    %888 = vmatpush.msra.mxu0 0.0
    %889 = vmatpush.msra.mxu0 0.0
    %890 = vmatpush.msra.mxu0 0.0
    %891 = vmatpush.msra.mxu0 0.0
    %892 = vmatpush.msra.mxu0 0.0
    %893 = vmatpush.msra.mxu0 0.0
    %894 = vmatpush.msra.mxu0 %v820
    %895 = vmatpush.msra.mxu0 %v791
    %896 = vmatpush.msra.mxu0 %v786
    %897 = vmatpush.msra.mxu0 %v781
    %898 = vmatpush.msra.mxu0 %v776
    %899 = vmatpush.msra.mxu0 %v771
    %900 = vmatpush.msra.mxu0 %v766
    %901 = vmatmul.f32.gmra.mxu0 %v222
    %v902 = vpop.f32.mrf.mxu0
    %v903 = vadd.f32 %v803, %v902
    %904 = vdwg.mxu0
    %905 = vmatpush.msra.mxu0 0.0
    %906 = vmatpush.msra.mxu0 0.0
    %907 = vmatpush.msra.mxu0 0.0
    %908 = vmatpush.msra.mxu0 0.0
    %909 = vmatpush.msra.mxu0 0.0
    %910 = vmatpush.msra.mxu0 0.0
    %911 = vmatpush.msra.mxu0 0.0
    %912 = vmatpush.msra.mxu0 0.0
    %913 = vmatpush.msra.mxu0 0.0
    %914 = vmatpush.msra.mxu0 %v823
    %915 = vmatpush.msra.mxu0 %v792
    %916 = vmatpush.msra.mxu0 %v787
    %917 = vmatpush.msra.mxu0 %v782
    %918 = vmatpush.msra.mxu0 %v777
    %919 = vmatpush.msra.mxu0 %v772
    %920 = vmatpush.msra.mxu0 %v767
    %921 = vmatmul.f32.gmra.mxu0 %v222
    %v922 = vpop.f32.mrf.mxu0
    %v923 = vadd.f32 %v804, %v922
    %924 = vdwg.mxu0
    %v925 = vmul.f32 %v843, 0.5
    %v926 = vmul.f32 %v863, 0.5
    %v927 = vmul.f32 %v883, 0.5
    %v928 = vmul.f32 %v903, 0.5
    %v929 = vmul.f32 %v923, 0.5
    %v930 = vtanh.pop %v925
    %v931 = vtanh.pop %v926
    %v932 = vtanh.pop %v927
    %v933 = vtanh.pop %v928
    %v934 = vtanh.pop %v929
    %v935 = vmul.f32 %v930, 0.5
    %v936 = vmul.f32 %v931, 0.5
    %v937 = vmul.f32 %v932, 0.5
    %v938 = vmul.f32 %v933, 0.5
    %v939 = vmul.f32 %v934, 0.5
    %v940 = vadd.f32 %v935, 0.5
    %v941 = vadd.f32 %v936, 0.5
    %v942 = vadd.f32 %v937, 0.5
    %v943 = vadd.f32 %v938, 0.5
    %v944 = vadd.f32 %v939, 0.5
    %v945 = vmul.f32 %v940, 0.8
    %v946 = vmul.f32 %v941, 0.8
    %v947 = vmul.f32 %v942, 0.8
    %v948 = vmul.f32 %v943, 0.8
    %v949 = vmul.f32 %v944, 0.8
    %v954 = vrot.slane %v946, 4
    %v955 = vrot.slane %v948, 4
    %v956 = vsel %vm513, %v945, %v954
    %v957 = vsel %vm513, %v947, %v955
    %960 = vst [vmem:[%s7] sm:$0xff] %v956
    %961 = vst [vmem:[%s7 + $0x8] sm:$0xff] %v957
    %962 = vst.msk [vmem:[%s7 + $0x10] sm:$0xf] %vm761, %v949
    %v963 = vld [vmem:[#allocation2 + $0xa0] sm:$0xff]
    %v964 = vld [vmem:[#allocation2 + $0xa8] sm:$0xff]
    %v965 = vld [vmem:[#allocation2 + $0xb0] sm:$0xff]
    %v966 = vld [vmem:[#allocation2 + $0x170] sm:$0xff]
    %v967 = vld [vmem:[#allocation2 + $0x178] sm:$0xff]
    %v968 = vld [vmem:[#allocation2 + $0x180] sm:$0xff]
    %v969 = vld [vmem:[#allocation2 + $0x240] sm:$0xff]
    %v970 = vld [vmem:[#allocation2 + $0x248] sm:$0xff]
    %v971 = vld [vmem:[#allocation2 + $0x250] sm:$0xff]
    %v972 = vld [vmem:[#allocation2 + $0x310] sm:$0xff]
    %v973 = vld [vmem:[#allocation2 + $0x318] sm:$0xff]
    %v974 = vld [vmem:[#allocation2 + $0x320] sm:$0xff]
    %v975 = vld [vmem:[#allocation2 + $0x3e0] sm:$0xff]
    %v976 = vld [vmem:[#allocation2 + $0x3e8] sm:$0xff]
    %v977 = vld [vmem:[#allocation2 + $0x3f0] sm:$0xff]
    %v978 = vld [vmem:[#allocation2 + $0x4b0] sm:$0xff]
    %v979 = vld [vmem:[#allocation2 + $0x4b8] sm:$0xff]
    %v980 = vld [vmem:[#allocation2 + $0x4c0] sm:$0xff]
    %v981 = vld [vmem:[#allocation2 + $0x580] sm:$0x3]
    %v982 = vld [vmem:[#allocation2 + $0x588] sm:$0x3]
    %v983 = vld [vmem:[#allocation2 + $0x590] sm:$0x3]
    %v984 = vld [vmem:[%s4 + $0x14] sm:$0x7]
    %v986 = vperm.slane %v984, 0
    %v987 = vperm.slane %v984, 1
    %v988 = vperm.slane %v984, 2
    %v993 = vsel %vm78, %v981, 0
    %v996 = vsel %vm78, %v982, 0
    %v999 = vsel %vm78, %v983, 0
    %1001 = vmatpush.msra.mxu0 0.0
    %1002 = vmatpush.msra.mxu0 0.0
    %1003 = vmatpush.msra.mxu0 0.0
    %1004 = vmatpush.msra.mxu0 0.0
    %1005 = vmatpush.msra.mxu0 0.0
    %1006 = vmatpush.msra.mxu0 0.0
    %1007 = vmatpush.msra.mxu0 0.0
    %1008 = vmatpush.msra.mxu0 0.0
    %1009 = vmatpush.msra.mxu0 0.0
    %1010 = vmatpush.msra.mxu0 %v993
    %1011 = vmatpush.msra.mxu0 %v978
    %1012 = vmatpush.msra.mxu0 %v975
    %1013 = vmatpush.msra.mxu0 %v972
    %1014 = vmatpush.msra.mxu0 %v969
    %1015 = vmatpush.msra.mxu0 %v966
    %1016 = vmatpush.msra.mxu0 %v963
    %1017 = vmatmul.f32.gmra.mxu0 %v222
    %v1018 = vpop.f32.mrf.mxu0
    %v1019 = vadd.f32 %v986, %v1018
    %1020 = vdwg.mxu0
    %1021 = vmatpush.msra.mxu0 0.0
    %1022 = vmatpush.msra.mxu0 0.0
    %1023 = vmatpush.msra.mxu0 0.0
    %1024 = vmatpush.msra.mxu0 0.0
    %1025 = vmatpush.msra.mxu0 0.0
    %1026 = vmatpush.msra.mxu0 0.0
    %1027 = vmatpush.msra.mxu0 0.0
    %1028 = vmatpush.msra.mxu0 0.0
    %1029 = vmatpush.msra.mxu0 0.0
    %1030 = vmatpush.msra.mxu0 %v996
    %1031 = vmatpush.msra.mxu0 %v979
    %1032 = vmatpush.msra.mxu0 %v976
    %1033 = vmatpush.msra.mxu0 %v973
    %1034 = vmatpush.msra.mxu0 %v970
    %1035 = vmatpush.msra.mxu0 %v967
    %1036 = vmatpush.msra.mxu0 %v964
    %1037 = vmatmul.f32.gmra.mxu0 %v222
    %v1038 = vpop.f32.mrf.mxu0
    %v1039 = vadd.f32 %v987, %v1038
    %1040 = vdwg.mxu0
    %1041 = vmatpush.msra.mxu0 0.0
    %1042 = vmatpush.msra.mxu0 0.0
    %1043 = vmatpush.msra.mxu0 0.0
    %1044 = vmatpush.msra.mxu0 0.0
    %1045 = vmatpush.msra.mxu0 0.0
    %1046 = vmatpush.msra.mxu0 0.0
    %1047 = vmatpush.msra.mxu0 0.0
    %1048 = vmatpush.msra.mxu0 0.0
    %1049 = vmatpush.msra.mxu0 0.0
    %1050 = vmatpush.msra.mxu0 %v999
    %1051 = vmatpush.msra.mxu0 %v980
    %1052 = vmatpush.msra.mxu0 %v977
    %1053 = vmatpush.msra.mxu0 %v974
    %1054 = vmatpush.msra.mxu0 %v971
    %1055 = vmatpush.msra.mxu0 %v968
    %1056 = vmatpush.msra.mxu0 %v965
    %1057 = vmatmul.f32.gmra.mxu0 %v222
    %v1058 = vpop.f32.mrf.mxu0
    %v1059 = vadd.f32 %v988, %v1058
    %1060 = vdwg.mxu0
    %v1063 = vrot.slane %v1039, 4
    %v1064 = vsel %vm513, %v1019, %v1063
    %1066 = vst [vmem:[%s8] sm:$0xff] %v1064
    %vm1067 = vcmask 396288
    %1068 = vst.msk [vmem:[%s8 + $0x8] sm:$0xf] %vm1067, %v1059
    %v1069 = vld [vmem:[#allocation2 + $0xb8] sm:$0xff]
    %v1070 = vld [vmem:[#allocation2 + $0xc0] sm:$0xff]
    %v1071 = vld [vmem:[#allocation2 + $0xc8] sm:$0xff]
    %v1072 = vld [vmem:[#allocation2 + $0x188] sm:$0xff]
    %v1073 = vld [vmem:[#allocation2 + $0x190] sm:$0xff]
    %v1074 = vld [vmem:[#allocation2 + $0x198] sm:$0xff]
    %v1075 = vld [vmem:[#allocation2 + $0x258] sm:$0xff]
    %v1076 = vld [vmem:[#allocation2 + $0x260] sm:$0xff]
    %v1077 = vld [vmem:[#allocation2 + $0x268] sm:$0xff]
    %v1078 = vld [vmem:[#allocation2 + $0x328] sm:$0xff]
    %v1079 = vld [vmem:[#allocation2 + $0x330] sm:$0xff]
    %v1080 = vld [vmem:[#allocation2 + $0x338] sm:$0xff]
    %v1081 = vld [vmem:[#allocation2 + $0x3f8] sm:$0xff]
    %v1082 = vld [vmem:[#allocation2 + $0x400] sm:$0xff]
    %v1083 = vld [vmem:[#allocation2 + $0x408] sm:$0xff]
    %v1084 = vld [vmem:[#allocation2 + $0x4c8] sm:$0xff]
    %v1085 = vld [vmem:[#allocation2 + $0x4d0] sm:$0xff]
    %v1086 = vld [vmem:[#allocation2 + $0x4d8] sm:$0xff]
    %v1087 = vld [vmem:[#allocation2 + $0x598] sm:$0x3]
    %v1088 = vld [vmem:[#allocation2 + $0x5a0] sm:$0x3]
    %v1089 = vld [vmem:[#allocation2 + $0x5a8] sm:$0x3]
    %v1090 = vld [vmem:[%s4 + $0x17] sm:$0x7]
    %v1092 = vperm.slane %v1090, 0
    %v1093 = vperm.slane %v1090, 1
    %v1094 = vperm.slane %v1090, 2
    %v1099 = vsel %vm78, %v1087, 0
    %v1102 = vsel %vm78, %v1088, 0
    %v1105 = vsel %vm78, %v1089, 0
    %1107 = vmatpush.msra.mxu0 0.0
    %1108 = vmatpush.msra.mxu0 0.0
    %1109 = vmatpush.msra.mxu0 0.0
    %1110 = vmatpush.msra.mxu0 0.0
    %1111 = vmatpush.msra.mxu0 0.0
    %1112 = vmatpush.msra.mxu0 0.0
    %1113 = vmatpush.msra.mxu0 0.0
    %1114 = vmatpush.msra.mxu0 0.0
    %1115 = vmatpush.msra.mxu0 0.0
    %1116 = vmatpush.msra.mxu0 %v1099
    %1117 = vmatpush.msra.mxu0 %v1084
    %1118 = vmatpush.msra.mxu0 %v1081
    %1119 = vmatpush.msra.mxu0 %v1078
    %1120 = vmatpush.msra.mxu0 %v1075
    %1121 = vmatpush.msra.mxu0 %v1072
    %1122 = vmatpush.msra.mxu0 %v1069
    %1123 = vmatmul.f32.gmra.mxu0 %v222
    %v1124 = vpop.f32.mrf.mxu0
    %v1125 = vadd.f32 %v1092, %v1124
    %1126 = vdwg.mxu0
    %1127 = vmatpush.msra.mxu0 0.0
    %1128 = vmatpush.msra.mxu0 0.0
    %1129 = vmatpush.msra.mxu0 0.0
    %1130 = vmatpush.msra.mxu0 0.0
    %1131 = vmatpush.msra.mxu0 0.0
    %1132 = vmatpush.msra.mxu0 0.0
    %1133 = vmatpush.msra.mxu0 0.0
    %1134 = vmatpush.msra.mxu0 0.0
    %1135 = vmatpush.msra.mxu0 0.0
    %1136 = vmatpush.msra.mxu0 %v1102
    %1137 = vmatpush.msra.mxu0 %v1085
    %1138 = vmatpush.msra.mxu0 %v1082
    %1139 = vmatpush.msra.mxu0 %v1079
    %1140 = vmatpush.msra.mxu0 %v1076
    %1141 = vmatpush.msra.mxu0 %v1073
    %1142 = vmatpush.msra.mxu0 %v1070
    %1143 = vmatmul.f32.gmra.mxu0 %v222
    %v1144 = vpop.f32.mrf.mxu0
    %v1145 = vadd.f32 %v1093, %v1144
    %1146 = vdwg.mxu0
    %1147 = vmatpush.msra.mxu0 0.0
    %1148 = vmatpush.msra.mxu0 0.0
    %1149 = vmatpush.msra.mxu0 0.0
    %1150 = vmatpush.msra.mxu0 0.0
    %1151 = vmatpush.msra.mxu0 0.0
    %1152 = vmatpush.msra.mxu0 0.0
    %1153 = vmatpush.msra.mxu0 0.0
    %1154 = vmatpush.msra.mxu0 0.0
    %1155 = vmatpush.msra.mxu0 0.0
    %1156 = vmatpush.msra.mxu0 %v1105
    %1157 = vmatpush.msra.mxu0 %v1086
    %1158 = vmatpush.msra.mxu0 %v1083
    %1159 = vmatpush.msra.mxu0 %v1080
    %1160 = vmatpush.msra.mxu0 %v1077
    %1161 = vmatpush.msra.mxu0 %v1074
    %1162 = vmatpush.msra.mxu0 %v1071
    %1163 = vmatmul.f32.gmra.mxu0 %v222
    %v1164 = vpop.f32.mrf.mxu0
    %v1165 = vadd.f32 %v1094, %v1164
    %1166 = vdwg.mxu0
    %v1167 = vmax.f32 %v1125, 0.0
    %v1168 = vmax.f32 %v1145, 0.0
    %v1169 = vmax.f32 %v1165, 0.0
    %v1170 = vand.u32 2147483647, %v1125
    %v1171 = vand.u32 2147483647, %v1145
    %v1172 = vand.u32 2147483647, %v1165
    %v1173 = vsub.f32 0.0, %v1170
    %v1174 = vsub.f32 0.0, %v1171
    %v1175 = vsub.f32 0.0, %v1172
    %v1176 = vmul.f32 %v1173, 1.442695
    %v1177 = vpow.pop %v1176
    %v1178 = vmul.f32 %v1174, 1.442695
    %v1179 = vpow.pop %v1178
    %v1180 = vmul.f32 %v1175, 1.442695
    %v1181 = vpow.pop %v1180
    %v1182 = vadd.f32 %v1177, 1.0
    %v1183 = vadd.f32 %v1179, 1.0
    %v1184 = vadd.f32 %v1181, 1.0
    %v1185 = vlog2.pop %v1182
    %v1186 = vmul.f32 %v1185, 0.6931472
    %v1187 = vlog2.pop %v1183
    %v1188 = vmul.f32 %v1187, 0.6931472
    %v1189 = vlog2.pop %v1184
    %v1190 = vmul.f32 %v1189, 0.6931472
    %v1191 = vadd.f32 %v1167, %v1186
    %v1192 = vadd.f32 %v1168, %v1188
    %v1193 = vadd.f32 %v1169, %v1190
    %v1196 = vrot.slane %v1192, 4
    %v1197 = vsel %vm513, %v1191, %v1196
    %1199 = vst [vmem:[%s9] sm:$0xff] %v1197
    %1200 = vst.msk [vmem:[%s9 + $0x8] sm:$0xf] %vm1067, %v1193
    // Predicated region
    $region26: #{_mdn_forward_impl.1} parent=1 // pred_check
      _
    $region27: #{_mdn_forward_impl.1} parent=1 // pred_check_branch
      %1202 = sbr.rel (0) target = $region29
    $region28: #{_mdn_forward_impl.1} parent=1 // pred_region
      _
    $region29: #{_mdn_forward_impl.1} parent=1 // pred_fallthru
      _
    // Predicated region
    $region30: #{_mdn_forward_impl.1} parent=1 // pred_check
      _
    $region31: #{_mdn_forward_impl.1} parent=1 // pred_check_branch
      %1204 = sbr.rel (0) target = $region33
    $region32: #{_mdn_forward_impl.1} parent=1 // pred_region
      _
    $region33: #{_mdn_forward_impl.1} parent=1 // pred_fallthru
      _
    // Predicated region
    $region34: #{_mdn_forward_impl.1} parent=1 // pred_check
      _
    $region35: #{_mdn_forward_impl.1} parent=1 // pred_check_branch
      %1206 = sbr.rel (0) target = $region37
    $region36: #{_mdn_forward_impl.1} parent=1 // pred_region
      _
    $region37: #{_mdn_forward_impl.1} parent=1 // pred_fallthru
      _
    // Predicated region
    $region38: #{_mdn_forward_impl.1} parent=1 // pred_check
      _
    $region39: #{_mdn_forward_impl.1} parent=1 // pred_check_branch
      %1208 = sbr.rel (0) target = $region41
    $region40: #{_mdn_forward_impl.1} parent=1 // pred_region
      _
    $region41: #{_mdn_forward_impl.1} parent=1 // pred_fallthru
      _
    // Predicated region
    $region42: #{_mdn_forward_impl.1} parent=1 // pred_check
      _
    $region43: #{_mdn_forward_impl.1} parent=1 // pred_check_branch
      %1210 = sbr.rel (0) target = $region45
    $region44: #{_mdn_forward_impl.1} parent=1 // pred_region
      _
    $region45: #{_mdn_forward_impl.1} parent=1 // pred_fallthru
      _
    // Predicated region
    $region46: #{_mdn_forward_impl.1} parent=1 // pred_check
      _
    $region47: #{_mdn_forward_impl.1} parent=1 // pred_check_branch
      %1212 = sbr.rel (0) target = $region49
    $region48: #{_mdn_forward_impl.1} parent=1 // pred_region
      _
    $region49: #{_mdn_forward_impl.1} parent=1 // pred_fallthru
      _
    // Predicated region
    $region50: #{_mdn_forward_impl.1} parent=1 // pred_check
      _
    $region51: #{_mdn_forward_impl.1} parent=1 // pred_check_branch
      %1214 = sbr.rel (0) target = $region53
    $region52: #{_mdn_forward_impl.1} parent=1 // pred_region
      _
    $region53: #{_mdn_forward_impl.1} parent=1 // pred_fallthru
      _
    // Predicated region
    $region54: #{_mdn_forward_impl.1} parent=1 // pred_check
      _
    $region55: #{_mdn_forward_impl.1} parent=1 // pred_check_branch
      %1216 = sbr.rel (0) target = $region57
    $region56: #{_mdn_forward_impl.1} parent=1 // pred_region
      _
    $region57: #{_mdn_forward_impl.1} parent=1 // pred_fallthru
      _
    // Predicated region
    $region58: #{_mdn_forward_impl.1} parent=1 // pred_check
      _
    $region59: #{_mdn_forward_impl.1} parent=1 // pred_check_branch
      %1218 = sbr.rel (0) target = $region61
    $region60: #{_mdn_forward_impl.1} parent=1 // pred_region
      _
    $region61: #{_mdn_forward_impl.1} parent=1 // pred_fallthru
      _
    // Predicated region
    $region62: #{_mdn_forward_impl.1} parent=1 // pred_check
      _
    $region63: #{_mdn_forward_impl.1} parent=1 // pred_check_branch
      %1220 = sbr.rel (0) target = $region65
    $region64: #{_mdn_forward_impl.1} parent=1 // pred_region
      _
    $region65: #{_mdn_forward_impl.1} parent=1 // pred_fallthru
      _
    %1221 = vsyncpa [#allocation3], 1

</llo_original>
